<compile_context>
chip_gen: v7x
topology: tpu7x:2x2x1
jax: 0.10.0
libtpu: 0.0.40
codegen_flags: <defaults>
</compile_context>

<pallas_src>
import functools

import jax
import jax.numpy as jnp
from jax import lax
from jax.experimental import pallas as pl
from jax.experimental.pallas import tpu as pltpu


# ---------------------------------------------------------------------------
# Fused Pallas kernel
# ---------------------------------------------------------------------------

def _fused_block_kernel(x_ref, we_ref, be_ref, wd_ref, bd_ref, wl_ref, bl_ref,
                        o_ref, h_ref, *, K, pad, tile_h, H, W, with_residual):
    """One (batch, row-strip) tile of expand -> depthwise -> linear (+res).

    x_ref : (Hp, Wp8, Cin)  zero-padded input image, resident per batch elem
    h_ref : (tile_h + 2*pad, Wp8, Cmid) f32 VMEM scratch (expanded activation)
    o_ref : (tile_h, W, Cout)
    """
    i = pl.program_id(1)
    th_p = tile_h + 2 * pad
    wp8 = x_ref.shape[1]
    c_in = x_ref.shape[2]
    c_mid = we_ref.shape[1]
    c_out = wl_ref.shape[1]

    r0 = pl.multiple_of(i * tile_h, tile_h)         # strip start (padded rows)

    # ---- expand_conv: 1x1 conv (MXU matmul) + folded BN bias + ReLU --------
    x_halo = x_ref[pl.ds(r0, th_p), :, :]                   # (th_p, wp8, Cin)
    x2d = x_halo.reshape(th_p * wp8, c_in)                  # wp8 % 8 == 0
    e = jnp.dot(x2d, we_ref[...], preferred_element_type=jnp.float32)
    e = jnp.maximum(e + be_ref[...], 0.0)                   # (th_p*wp8, Cmid)
    e = e.reshape(th_p, wp8, c_mid)

    # Positions that correspond to the depthwise conv's zero padding must be
    # exactly zero (expand of a padded-zero pixel is relu(bias) != 0).
    rows = lax.broadcasted_iota(jnp.int32, (th_p, wp8, c_mid), 0)
    cols = lax.broadcasted_iota(jnp.int32, (th_p, wp8, c_mid), 1)
    g_row = rows + (r0 - pad)                               # row in h-space
    valid = ((g_row >= 0) & (g_row < H) & (cols >= pad) & (cols < pad + W))
    h_ref[...] = jnp.where(valid, e, 0.0)

    # ---- depthwise_conv: KxK, stride 1 + folded BN bias + ReLU (f32 VPU) ---
    acc = jnp.zeros((tile_h, W, c_mid), jnp.float32)
    for kh in range(K):
        for kw in range(K):
            tap = h_ref[kh:kh + tile_h, kw:kw + W, :]       # (tile_h, W, Cmid)
            acc = acc + tap * wd_ref[kh * K + kw, :]
    d = jnp.maximum(acc + bd_ref[0, :], 0.0)

    # ---- linear_conv: 1x1 conv + folded BN bias (no act) + residual --------
    d2d = d.reshape(tile_h * W, c_mid).astype(wl_ref.dtype)
    out = jnp.dot(d2d, wl_ref[...], preferred_element_type=jnp.float32)
    out = out + bl_ref[...]
    if with_residual:
        res = x_ref[pl.ds(r0 + pad, tile_h), pad:pad + W, :]
        out = out + res.reshape(tile_h * W, c_out).astype(jnp.float32)
    o_ref[...] = out.reshape(tile_h, W, c_out).astype(o_ref.dtype)


# ---------------------------------------------------------------------------
# Host wrapper
# ---------------------------------------------------------------------------

def _fold_bn(gamma, beta, mean, var, eps=1e-5):
    scale = gamma / jnp.sqrt(var + eps)
    bias = beta - mean * scale
    return scale.astype(jnp.float32), bias.astype(jnp.float32)


def _pick_tile_h(H, target):
    th = max(1, min(target, H))
    while H % th:
        th -= 1
    return th


def inverted_residual_v3(x_nchw, params, *, kernel_size=3, tile_h=8):
    """InvertedResidualV3 forward (stride=1, no SE, eval-mode BN folded)."""
    N, Cin, H, W = x_nchw.shape
    K = kernel_size
    pad = K // 2
    dtype = x_nchw.dtype

    # NCHW -> NHWC (channels on the 128-lane axis).
    # TODO(synk): accept/emit NHWC directly in a real network to drop the two
    #             wrapper transposes (two extra HBM passes over the I/O).
    x = jnp.transpose(x_nchw, (0, 2, 3, 1))

    # Fold eval-mode BN: w' = w * scale, plus a per-channel bias.
    s_e, b_e = _fold_bn(*params["bn_expand"])
    s_d, b_d = _fold_bn(*params["bn_dw"])
    s_l, b_l = _fold_bn(*params["bn_linear"])
    w_e = (params["w_expand"] * s_e[None, :]).astype(dtype)     # (Cin, Cmid)
    w_d = (params["w_dw"] * s_d[None, :]).astype(jnp.float32)   # (K*K, Cmid)
    w_l = (params["w_linear"] * s_l[None, :]).astype(dtype)     # (Cmid, Cout)
    b_e = b_e.reshape(1, -1)
    b_d = b_d.reshape(1, -1)
    b_l = b_l.reshape(1, -1)

    Cmid = w_e.shape[1]
    Cout = w_l.shape[1]
    with_residual = (Cin == Cout)                # stride == 1 always here

    # Zero-pad only the small Cin-channel input once: K//2 halo rows/cols plus
    # extra zero columns so the padded width is a multiple of 8 (keeps every
    # in-kernel reshape layout-trivial). Padded positions are re-masked to
    # zero after the expand conv inside the kernel.
    tile_h = _pick_tile_h(H, tile_h)
    Hp = H + 2 * pad
    Wp8 = ((W + 2 * pad + 7) // 8) * 8
    x_pad = jnp.pad(x, ((0, 0), (pad, pad), (pad, Wp8 - W - pad), (0, 0)))

    grid = (N, H // tile_h)
    kernel = functools.partial(_fused_block_kernel, K=K, pad=pad,
                               tile_h=tile_h, H=H, W=W,
                               with_residual=with_residual)

    out_nhwc = pl.pallas_call(
        kernel,
        out_shape=jax.ShapeDtypeStruct((N, H, W, Cout), dtype),
        grid_spec=pltpu.PrefetchScalarGridSpec(
            num_scalar_prefetch=0,
            grid=grid,
            in_specs=[
                # Whole padded image per batch element; block index depends
                # only on `n`, so consecutive row-strip steps reuse the
                # resident VMEM copy (no re-DMA per strip).
                pl.BlockSpec((None, Hp, Wp8, Cin), lambda n, i: (n, 0, 0, 0)),
                pl.BlockSpec((Cin, Cmid), lambda n, i: (0, 0)),
                pl.BlockSpec((1, Cmid), lambda n, i: (0, 0)),
                pl.BlockSpec((K * K, Cmid), lambda n, i: (0, 0)),
                pl.BlockSpec((1, Cmid), lambda n, i: (0, 0)),
                pl.BlockSpec((Cmid, Cout), lambda n, i: (0, 0)),
                pl.BlockSpec((1, Cout), lambda n, i: (0, 0)),
            ],
            out_specs=pl.BlockSpec((None, tile_h, W, Cout),
                                   lambda n, i: (n, i, 0, 0)),
            scratch_shapes=[
                pltpu.VMEM((tile_h + 2 * pad, Wp8, Cmid), jnp.float32),
            ],
        ),
        compiler_params=pltpu.CompilerParams(
            dimension_semantics=("parallel", "parallel"),
            vmem_limit_bytes=32 * 1024 * 1024,
        ),
    )(x_pad, w_e, b_e, w_d, b_d, w_l, b_l)

    return jnp.transpose(out_nhwc, (0, 3, 1, 2))     # NHWC -> NCHW


# ---------------------------------------------------------------------------
# Pure-JAX reference (verification only)
# ---------------------------------------------------------------------------

def _reference(x_nchw, params, K):
    x = jnp.transpose(x_nchw, (0, 2, 3, 1)).astype(jnp.float32)
    dn = ("NHWC", "HWIO", "NHWC")

    def bn(y, p):
        gamma, beta, mean, var = p
        return gamma * (y - mean) / jnp.sqrt(var + 1e-5) + beta

    Cin = x.shape[-1]
    Cmid = params["w_expand"].shape[1]
    Cout = params["w_linear"].shape[1]

    we = params["w_expand"].reshape(1, 1, Cin, Cmid)
    h = lax.conv_general_dilated(x, we, (1, 1), "VALID", dimension_numbers=dn)
    h = jnp.maximum(bn(h, params["bn_expand"]), 0.0)

    wd = params["w_dw"].reshape(K, K, 1, Cmid)
    h = lax.conv_general_dilated(h, wd, (1, 1), "SAME",
                                 dimension_numbers=dn,
                                 feature_group_count=Cmid)
    h = jnp.maximum(bn(h, params["bn_dw"]), 0.0)

    wl = params["w_linear"].reshape(1, 1, Cmid, Cout)
    o = lax.conv_general_dilated(h, wl, (1, 1), "VALID", dimension_numbers=dn)
    o = bn(o, params["bn_linear"]) + x
    return jnp.transpose(o, (0, 3, 1, 2))


# ---------------------------------------------------------------------------
# Main
# ---------------------------------------------------------------------------

if __name__ == "__main__":
    N, Cin, H, W = 2, 16, 16, 16
    Cmid, Cout, K = 32, 16, 3          # in==out, stride==1 -> residual active

    key = jax.random.PRNGKey(0)
    k = jax.random.split(key, 8)

    x_nchw = jax.random.normal(k[0], (N, Cin, H, W), jnp.float32)

    # PyTorch-shaped weights -> NHWC-friendly layouts.
    w_expand_pt = 0.1 * jax.random.normal(k[1], (Cmid, Cin), jnp.float32)   # (mid,in,1,1)
    w_dw_pt = 0.1 * jax.random.normal(k[2], (Cmid, K, K), jnp.float32)      # (mid,1,K,K)
    w_linear_pt = 0.1 * jax.random.normal(k[3], (Cout, Cmid), jnp.float32)  # (out,mid,1,1)

    def bn_params(key, c):
        kk = jax.random.split(key, 4)
        gamma = 1.0 + 0.1 * jax.random.normal(kk[0], (c,), jnp.float32)
        beta = 0.1 * jax.random.normal(kk[1], (c,), jnp.float32)
        mean = 0.1 * jax.random.normal(kk[2], (c,), jnp.float32)
        var = 1.0 + 0.1 * jax.random.uniform(kk[3], (c,), jnp.float32)
        return (gamma, beta, mean, var)

    params = {
        "w_expand": w_expand_pt.T,                                     # (Cin, Cmid)
        "w_dw": jnp.transpose(w_dw_pt, (1, 2, 0)).reshape(K * K, Cmid),
        "w_linear": w_linear_pt.T,                                     # (Cmid, Cout)
        "bn_expand": bn_params(k[4], Cmid),
        "bn_dw": bn_params(k[5], Cmid),
        "bn_linear": bn_params(k[6], Cout),
    }

    fwd = jax.jit(lambda x: inverted_residual_v3(x, params, kernel_size=K))

    # f32 run vs. reference
    out = jax.block_until_ready(fwd(x_nchw))
    ref = _reference(x_nchw, params, K)
    assert out.shape == (N, Cout, H, W)
    assert jnp.allclose(out, ref, rtol=2e-3, atol=2e-3), (
        float(jnp.max(jnp.abs(out - ref))))

    # bf16 storage / bf16 MXU run (f32 accumulation inside the kernel).
    out_bf16 = jax.block_until_ready(fwd(x_nchw.astype(jnp.bfloat16)))
    assert out_bf16.dtype == jnp.bfloat16
    err = float(jnp.max(jnp.abs(out_bf16.astype(jnp.float32) - ref)))
    assert err < 0.25, err

    print("KERNEL_OK")
</pallas_src>

<mosaic_0001>
module attributes {stable_mosaic.version = 11 : i64} {
  func.func @_fused_block_kernel(%arg0: i32, %arg1: i32, %arg2: memref<1x18x24x16xf32, #tpu.memory_space<vmem>>, %arg3: memref<16x32xf32, #tpu.memory_space<vmem>>, %arg4: memref<1x32xf32, #tpu.memory_space<vmem>>, %arg5: memref<9x32xf32, #tpu.memory_space<vmem>>, %arg6: memref<1x32xf32, #tpu.memory_space<vmem>>, %arg7: memref<32x16xf32, #tpu.memory_space<vmem>>, %arg8: memref<1x16xf32, #tpu.memory_space<vmem>>, %arg9: memref<1x8x16x16xf32, #tpu.memory_space<vmem>>, %arg10: memref<10x24x32xf32, #tpu.memory_space<vmem>>) attributes {dimension_semantics = [#tpu.dimension_semantics<parallel>, #tpu.dimension_semantics<parallel>], iteration_bounds = array<i64: 2, 2>, scalar_prefetch = 0 : i64, scratch_operands = 1 : i64, tpu.core_type = #tpu.core_type<tc>, window_params = [{transform_indices = @transform_0, window_bounds = array<i64: 1, 18, 24, 16>}, {pipeline_mode = #tpu.pipeline_mode<synchronous>, transform_indices = @transform_1, window_bounds = array<i64: 16, 32>}, {pipeline_mode = #tpu.pipeline_mode<synchronous>, transform_indices = @transform_2, window_bounds = array<i64: 1, 32>}, {pipeline_mode = #tpu.pipeline_mode<synchronous>, transform_indices = @transform_3, window_bounds = array<i64: 9, 32>}, {pipeline_mode = #tpu.pipeline_mode<synchronous>, transform_indices = @transform_4, window_bounds = array<i64: 1, 32>}, {pipeline_mode = #tpu.pipeline_mode<synchronous>, transform_indices = @transform_5, window_bounds = array<i64: 32, 16>}, {pipeline_mode = #tpu.pipeline_mode<synchronous>, transform_indices = @transform_6, window_bounds = array<i64: 1, 16>}, {transform_indices = @transform_7, window_bounds = array<i64: 1, 8, 16, 16>}]} {
    %c8_i32 = arith.constant 8 : i32
    %0 = arith.muli %arg1, %c8_i32 : i32
    %1 = tpu.assume_multiple %0, 8 : i32
    %c0 = arith.constant 0 : index
    %2 = arith.index_cast %1 : i32 to index
    %c0_0 = arith.constant 0 : index
    %c0_1 = arith.constant 0 : index
    %3 = vector.load %arg2[%c0, %2, %c0_0, %c0_1] : memref<1x18x24x16xf32, #tpu.memory_space<vmem>>, vector<1x10x24x16xf32>
    %4 = vector.shape_cast %3 : vector<1x10x24x16xf32> to vector<10x24x16xf32>
    %5 = vector.shape_cast %4 : vector<10x24x16xf32> to vector<240x16xf32>
    %c0_2 = arith.constant 0 : index
    %c0_3 = arith.constant 0 : index
    %6 = vector.load %arg3[%c0_2, %c0_3] : memref<16x32xf32, #tpu.memory_space<vmem>>, vector<16x32xf32>
    %cst = arith.constant dense<0.000000e+00> : vector<240x32xf32>
    %7 = tpu.matmul %5, %6, %cst {dimension_numbers = #tpu.dot_dimension_numbers<[1], [0], [0], [1], [0, 0, 1, 1], [], []>} : vector<240x16xf32>, vector<16x32xf32>, vector<240x32xf32> -> vector<240x32xf32>
    %c0_4 = arith.constant 0 : index
    %c0_5 = arith.constant 0 : index
    %8 = vector.load %arg4[%c0_4, %c0_5] : memref<1x32xf32, #tpu.memory_space<vmem>>, vector<1x32xf32>
    %9 = vector.broadcast %8 : vector<1x32xf32> to vector<240x32xf32>
    %10 = arith.addf %7, %9 : vector<240x32xf32>
    %cst_6 = arith.constant 0.000000e+00 : f32
    %11 = vector.broadcast %cst_6 : f32 to vector<240x32xf32>
    %12 = arith.maximumf %10, %11 : vector<240x32xf32>
    %13 = vector.shape_cast %12 : vector<240x32xf32> to vector<10x24x32xf32>
    %14 = tpu.iota {dimensions = array<i32: 0>} : vector<10x24x32xi32>
    %15 = tpu.iota {dimensions = array<i32: 1>} : vector<10x24x32xi32>
    %c1_i32 = arith.constant 1 : i32
    %16 = arith.subi %1, %c1_i32 : i32
    %17 = vector.broadcast %16 : i32 to vector<10x24x32xi32>
    %18 = arith.addi %14, %17 : vector<10x24x32xi32>
    %c0_i32 = arith.constant 0 : i32
    %19 = vector.broadcast %c0_i32 : i32 to vector<10x24x32xi32>
    %20 = arith.cmpi sge, %18, %19 : vector<10x24x32xi32>
    %c16_i32 = arith.constant 16 : i32
    %21 = vector.broadcast %c16_i32 : i32 to vector<10x24x32xi32>
    %22 = arith.cmpi slt, %18, %21 : vector<10x24x32xi32>
    %23 = arith.andi %20, %22 : vector<10x24x32xi1>
    %c1_i32_7 = arith.constant 1 : i32
    %24 = vector.broadcast %c1_i32_7 : i32 to vector<10x24x32xi32>
    %25 = arith.cmpi sge, %15, %24 : vector<10x24x32xi32>
    %26 = arith.andi %23, %25 : vector<10x24x32xi1>
    %c17_i32 = arith.constant 17 : i32
    %27 = vector.broadcast %c17_i32 : i32 to vector<10x24x32xi32>
    %28 = arith.cmpi slt, %15, %27 : vector<10x24x32xi32>
    %29 = arith.andi %26, %28 : vector<10x24x32xi1>
    %cst_8 = arith.constant 0.000000e+00 : f32
    %30 = vector.broadcast %cst_8 : f32 to vector<10x24x32xf32>
    %31 = arith.select %29, %13, %30 : vector<10x24x32xi1>, vector<10x24x32xf32>
    %c0_9 = arith.constant 0 : index
    %c0_10 = arith.constant 0 : index
    %c0_11 = arith.constant 0 : index
    %32 = vector.load %arg10[%c0_9, %c0_10, %c0_11] : memref<10x24x32xf32, #tpu.memory_space<vmem>>, vector<10x24x32xf32>
    tpu.vector_store %arg10[%c0_9, %c0_10, %c0_11], %31 {strides = array<i32>} : memref<10x24x32xf32, #tpu.memory_space<vmem>>, vector<10x24x32xf32>,
    %cst_12 = arith.constant 0.000000e+00 : f32
    %33 = vector.broadcast %cst_12 : f32 to vector<8x16x32xf32>
    %c0_13 = arith.constant 0 : index
    %c0_14 = arith.constant 0 : index
    %c0_15 = arith.constant 0 : index
    %34 = vector.load %arg10[%c0_13, %c0_14, %c0_15] : memref<10x24x32xf32, #tpu.memory_space<vmem>>, vector<8x16x32xf32>
    %c0_16 = arith.constant 0 : index
    %c0_17 = arith.constant 0 : index
    %35 = vector.load %arg5[%c0_16, %c0_17] : memref<9x32xf32, #tpu.memory_space<vmem>>, vector<1x32xf32>
    %36 = vector.shape_cast %35 : vector<1x32xf32> to vector<32xf32>
    %37 = vector.shape_cast %36 : vector<32xf32> to vector<1x1x32xf32>
    %38 = vector.broadcast %37 : vector<1x1x32xf32> to vector<8x16x32xf32>
    %39 = arith.mulf %34, %38 : vector<8x16x32xf32>
    %40 = arith.addf %33, %39 : vector<8x16x32xf32>
    %c0_18 = arith.constant 0 : index
    %c1 = arith.constant 1 : index
    %c0_19 = arith.constant 0 : index
    %41 = vector.load %arg10[%c0_18, %c1, %c0_19] : memref<10x24x32xf32, #tpu.memory_space<vmem>>, vector<8x16x32xf32>
    %c1_20 = arith.constant 1 : index
    %c0_21 = arith.constant 0 : index
    %42 = vector.load %arg5[%c1_20, %c0_21] : memref<9x32xf32, #tpu.memory_space<vmem>>, vector<1x32xf32>
    %43 = vector.shape_cast %42 : vector<1x32xf32> to vector<32xf32>
    %44 = vector.shape_cast %43 : vector<32xf32> to vector<1x1x32xf32>
    %45 = vector.broadcast %44 : vector<1x1x32xf32> to vector<8x16x32xf32>
    %46 = arith.mulf %41, %45 : vector<8x16x32xf32>
    %47 = arith.addf %40, %46 : vector<8x16x32xf32>
    %c0_22 = arith.constant 0 : index
    %c2 = arith.constant 2 : index
    %c0_23 = arith.constant 0 : index
    %48 = vector.load %arg10[%c0_22, %c2, %c0_23] : memref<10x24x32xf32, #tpu.memory_space<vmem>>, vector<8x16x32xf32>
    %c2_24 = arith.constant 2 : index
    %c0_25 = arith.constant 0 : index
    %49 = vector.load %arg5[%c2_24, %c0_25] : memref<9x32xf32, #tpu.memory_space<vmem>>, vector<1x32xf32>
    %50 = vector.shape_cast %49 : vector<1x32xf32> to vector<32xf32>
    %51 = vector.shape_cast %50 : vector<32xf32> to vector<1x1x32xf32>
    %52 = vector.broadcast %51 : vector<1x1x32xf32> to vector<8x16x32xf32>
    %53 = arith.mulf %48, %52 : vector<8x16x32xf32>
    %54 = arith.addf %47, %53 : vector<8x16x32xf32>
    %c1_26 = arith.constant 1 : index
    %c0_27 = arith.constant 0 : index
    %c0_28 = arith.constant 0 : index
    %55 = vector.load %arg10[%c1_26, %c0_27, %c0_28] : memref<10x24x32xf32, #tpu.memory_space<vmem>>, vector<8x16x32xf32>
    %c3 = arith.constant 3 : index
    %c0_29 = arith.constant 0 : index
    %56 = vector.load %arg5[%c3, %c0_29] : memref<9x32xf32, #tpu.memory_space<vmem>>, vector<1x32xf32>
    %57 = vector.shape_cast %56 : vector<1x32xf32> to vector<32xf32>
    %58 = vector.shape_cast %57 : vector<32xf32> to vector<1x1x32xf32>
    %59 = vector.broadcast %58 : vector<1x1x32xf32> to vector<8x16x32xf32>
    %60 = arith.mulf %55, %59 : vector<8x16x32xf32>
    %61 = arith.addf %54, %60 : vector<8x16x32xf32>
    %c1_30 = arith.constant 1 : index
    %c1_31 = arith.constant 1 : index
    %c0_32 = arith.constant 0 : index
    %62 = vector.load %arg10[%c1_30, %c1_31, %c0_32] : memref<10x24x32xf32, #tpu.memory_space<vmem>>, vector<8x16x32xf32>
    %c4 = arith.constant 4 : index
    %c0_33 = arith.constant 0 : index
    %63 = vector.load %arg5[%c4, %c0_33] : memref<9x32xf32, #tpu.memory_space<vmem>>, vector<1x32xf32>
    %64 = vector.shape_cast %63 : vector<1x32xf32> to vector<32xf32>
    %65 = vector.shape_cast %64 : vector<32xf32> to vector<1x1x32xf32>
    %66 = vector.broadcast %65 : vector<1x1x32xf32> to vector<8x16x32xf32>
    %67 = arith.mulf %62, %66 : vector<8x16x32xf32>
    %68 = arith.addf %61, %67 : vector<8x16x32xf32>
    %c1_34 = arith.constant 1 : index
    %c2_35 = arith.constant 2 : index
    %c0_36 = arith.constant 0 : index
    %69 = vector.load %arg10[%c1_34, %c2_35, %c0_36] : memref<10x24x32xf32, #tpu.memory_space<vmem>>, vector<8x16x32xf32>
    %c5 = arith.constant 5 : index
    %c0_37 = arith.constant 0 : index
    %70 = vector.load %arg5[%c5, %c0_37] : memref<9x32xf32, #tpu.memory_space<vmem>>, vector<1x32xf32>
    %71 = vector.shape_cast %70 : vector<1x32xf32> to vector<32xf32>
    %72 = vector.shape_cast %71 : vector<32xf32> to vector<1x1x32xf32>
    %73 = vector.broadcast %72 : vector<1x1x32xf32> to vector<8x16x32xf32>
    %74 = arith.mulf %69, %73 : vector<8x16x32xf32>
    %75 = arith.addf %68, %74 : vector<8x16x32xf32>
    %c2_38 = arith.constant 2 : index
    %c0_39 = arith.constant 0 : index
    %c0_40 = arith.constant 0 : index
    %76 = vector.load %arg10[%c2_38, %c0_39, %c0_40] : memref<10x24x32xf32, #tpu.memory_space<vmem>>, vector<8x16x32xf32>
    %c6 = arith.constant 6 : index
    %c0_41 = arith.constant 0 : index
    %77 = vector.load %arg5[%c6, %c0_41] : memref<9x32xf32, #tpu.memory_space<vmem>>, vector<1x32xf32>
    %78 = vector.shape_cast %77 : vector<1x32xf32> to vector<32xf32>
    %79 = vector.shape_cast %78 : vector<32xf32> to vector<1x1x32xf32>
    %80 = vector.broadcast %79 : vector<1x1x32xf32> to vector<8x16x32xf32>
    %81 = arith.mulf %76, %80 : vector<8x16x32xf32>
    %82 = arith.addf %75, %81 : vector<8x16x32xf32>
    %c2_42 = arith.constant 2 : index
    %c1_43 = arith.constant 1 : index
    %c0_44 = arith.constant 0 : index
    %83 = vector.load %arg10[%c2_42, %c1_43, %c0_44] : memref<10x24x32xf32, #tpu.memory_space<vmem>>, vector<8x16x32xf32>
    %c7 = arith.constant 7 : index
    %c0_45 = arith.constant 0 : index
    %84 = vector.load %arg5[%c7, %c0_45] : memref<9x32xf32, #tpu.memory_space<vmem>>, vector<1x32xf32>
    %85 = vector.shape_cast %84 : vector<1x32xf32> to vector<32xf32>
    %86 = vector.shape_cast %85 : vector<32xf32> to vector<1x1x32xf32>
    %87 = vector.broadcast %86 : vector<1x1x32xf32> to vector<8x16x32xf32>
    %88 = arith.mulf %83, %87 : vector<8x16x32xf32>
    %89 = arith.addf %82, %88 : vector<8x16x32xf32>
    %c2_46 = arith.constant 2 : index
    %c2_47 = arith.constant 2 : index
    %c0_48 = arith.constant 0 : index
    %90 = vector.load %arg10[%c2_46, %c2_47, %c0_48] : memref<10x24x32xf32, #tpu.memory_space<vmem>>, vector<8x16x32xf32>
    %c8 = arith.constant 8 : index
    %c0_49 = arith.constant 0 : index
    %91 = vector.load %arg5[%c8, %c0_49] : memref<9x32xf32, #tpu.memory_space<vmem>>, vector<1x32xf32>
    %92 = vector.shape_cast %91 : vector<1x32xf32> to vector<32xf32>
    %93 = vector.shape_cast %92 : vector<32xf32> to vector<1x1x32xf32>
    %94 = vector.broadcast %93 : vector<1x1x32xf32> to vector<8x16x32xf32>
    %95 = arith.mulf %90, %94 : vector<8x16x32xf32>
    %96 = arith.addf %89, %95 : vector<8x16x32xf32>
    %c0_50 = arith.constant 0 : index
    %c0_51 = arith.constant 0 : index
    %97 = vector.load %arg6[%c0_50, %c0_51] : memref<1x32xf32, #tpu.memory_space<vmem>>, vector<1x32xf32>
    %98 = vector.shape_cast %97 : vector<1x32xf32> to vector<32xf32>
    %99 = vector.shape_cast %98 : vector<32xf32> to vector<1x1x32xf32>
    %100 = vector.broadcast %99 : vector<1x1x32xf32> to vector<8x16x32xf32>
    %101 = arith.addf %96, %100 : vector<8x16x32xf32>
    %cst_52 = arith.constant 0.000000e+00 : f32
    %102 = vector.broadcast %cst_52 : f32 to vector<8x16x32xf32>
    %103 = arith.maximumf %101, %102 : vector<8x16x32xf32>
    %104 = vector.shape_cast %103 : vector<8x16x32xf32> to vector<128x32xf32>
    %c0_53 = arith.constant 0 : index
    %c0_54 = arith.constant 0 : index
    %105 = vector.load %arg7[%c0_53, %c0_54] : memref<32x16xf32, #tpu.memory_space<vmem>>, vector<32x16xf32>
    %cst_55 = arith.constant dense<0.000000e+00> : vector<128x16xf32>
    %106 = tpu.matmul %104, %105, %cst_55 {dimension_numbers = #tpu.dot_dimension_numbers<[1], [0], [0], [1], [0, 0, 1, 1], [], []>} : vector<128x32xf32>, vector<32x16xf32>, vector<128x16xf32> -> vector<128x16xf32>
    %c0_56 = arith.constant 0 : index
    %c0_57 = arith.constant 0 : index
    %107 = vector.load %arg8[%c0_56, %c0_57] : memref<1x16xf32, #tpu.memory_space<vmem>>, vector<1x16xf32>
    %108 = vector.broadcast %107 : vector<1x16xf32> to vector<128x16xf32>
    %109 = arith.addf %106, %108 : vector<128x16xf32>
    %c1_i32_58 = arith.constant 1 : i32
    %110 = arith.addi %1, %c1_i32_58 : i32
    %c0_59 = arith.constant 0 : index
    %111 = arith.index_cast %110 : i32 to index
    %c1_60 = arith.constant 1 : index
    %c0_61 = arith.constant 0 : index
    %112 = vector.load %arg2[%c0_59, %111, %c1_60, %c0_61] : memref<1x18x24x16xf32, #tpu.memory_space<vmem>>, vector<1x8x16x16xf32>
    %113 = vector.shape_cast %112 : vector<1x8x16x16xf32> to vector<8x16x16xf32>
    %114 = vector.shape_cast %113 : vector<8x16x16xf32> to vector<128x16xf32>
    %115 = arith.addf %109, %114 : vector<128x16xf32>
    %116 = vector.shape_cast %115 : vector<128x16xf32> to vector<8x16x16xf32>
    %c0_62 = arith.constant 0 : index
    %c0_63 = arith.constant 0 : index
    %c0_64 = arith.constant 0 : index
    %c0_65 = arith.constant 0 : index
    %117 = vector.load %arg9[%c0_62, %c0_63, %c0_64, %c0_65] : memref<1x8x16x16xf32, #tpu.memory_space<vmem>>, vector<1x8x16x16xf32>
    %118 = vector.shape_cast %117 : vector<1x8x16x16xf32> to vector<8x16x16xf32>
    %119 = vector.shape_cast %116 : vector<8x16x16xf32> to vector<1x8x16x16xf32>
    tpu.vector_store %arg9[%c0_62, %c0_63, %c0_64, %c0_65], %119 {strides = array<i32>} : memref<1x8x16x16xf32, #tpu.memory_space<vmem>>, vector<1x8x16x16xf32>,
    return
  }
  func.func @transform_0(%arg0: i32, %arg1: i32) -> (i32, i32, i32, i32) {
    %c0_i32 = arith.constant 0 : i32
    %c0_i32_0 = arith.constant 0 : i32
    %c0_i32_1 = arith.constant 0 : i32
    %c0_i32_2 = arith.constant 0 : i32
    return %arg0, %c0_i32, %c0_i32_0, %c0_i32_1 : i32, i32, i32, i32
  }
  func.func @transform_1(%arg0: i32, %arg1: i32) -> (i32, i32) {
    %c0_i32 = arith.constant 0 : i32
    %c0_i32_0 = arith.constant 0 : i32
    %c0_i32_1 = arith.constant 0 : i32
    return %c0_i32, %c0_i32_0 : i32, i32
  }
  func.func @transform_2(%arg0: i32, %arg1: i32) -> (i32, i32) {
    %c0_i32 = arith.constant 0 : i32
    %c0_i32_0 = arith.constant 0 : i32
    %c0_i32_1 = arith.constant 0 : i32
    return %c0_i32, %c0_i32_0 : i32, i32
  }
  func.func @transform_3(%arg0: i32, %arg1: i32) -> (i32, i32) {
    %c0_i32 = arith.constant 0 : i32
    %c0_i32_0 = arith.constant 0 : i32
    %c0_i32_1 = arith.constant 0 : i32
    return %c0_i32, %c0_i32_0 : i32, i32
  }
  func.func @transform_4(%arg0: i32, %arg1: i32) -> (i32, i32) {
    %c0_i32 = arith.constant 0 : i32
    %c0_i32_0 = arith.constant 0 : i32
    %c0_i32_1 = arith.constant 0 : i32
    return %c0_i32, %c0_i32_0 : i32, i32
  }
  func.func @transform_5(%arg0: i32, %arg1: i32) -> (i32, i32) {
    %c0_i32 = arith.constant 0 : i32
    %c0_i32_0 = arith.constant 0 : i32
    %c0_i32_1 = arith.constant 0 : i32
    return %c0_i32, %c0_i32_0 : i32, i32
  }
  func.func @transform_6(%arg0: i32, %arg1: i32) -> (i32, i32) {
    %c0_i32 = arith.constant 0 : i32
    %c0_i32_0 = arith.constant 0 : i32
    %c0_i32_1 = arith.constant 0 : i32
    return %c0_i32, %c0_i32_0 : i32, i32
  }
  func.func @transform_7(%arg0: i32, %arg1: i32) -> (i32, i32, i32, i32) {
    %c0_i32 = arith.constant 0 : i32
    %c0_i32_0 = arith.constant 0 : i32
    %c0_i32_1 = arith.constant 0 : i32
    return %arg0, %arg1, %c0_i32, %c0_i32_0 : i32, i32, i32, i32
  }
}

</mosaic_0001>

<llo_original>
// kernel: _lambda_.1
$region0: #{_lambda_.1}
  #allocation0 [shape = 'u32[]', space=smem, size = 0x4, offset = 0x4, fixed_abs, tag = 'smem constant byte address 0x4 - core index']
  #allocation1 [shape = 'u32[144,128]{1,0:T(1,128)}', space=vmem, size = 0x12000, scoped, tag = 'internal scratch']
  #allocation2 [shape = 'f32[10,24,32]{2,1,0:T(8,128)}', space=vmem, size = 0x1e000, scoped, tag = 'scratch operand']
  %s0 = inlined_call_operand.vmem [shape: f32[2,18,24,16], index: 0, kind: input, shape index: {}]
  %s1 = inlined_call_operand.vmem [shape: f32[16,32], index: 1, kind: input, shape index: {}]
  %s2 = inlined_call_operand.vmem [shape: f32[1,32], index: 2, kind: input, shape index: {}]
  %s3 = inlined_call_operand.vmem [shape: f32[9,32], index: 3, kind: input, shape index: {}]
  %s4 = inlined_call_operand.vmem [shape: f32[1,32], index: 4, kind: input, shape index: {}]
  %s5 = inlined_call_operand.vmem [shape: f32[32,16], index: 5, kind: input, shape index: {}]
  %s6 = inlined_call_operand.vmem [shape: f32[1,16], index: 6, kind: input, shape index: {}]
  %s7 = inlined_call_operand.vmem [shape: f32[2,16,16,16], index: 7, kind: output, shape index: {}]
  %s8 = sld [smem:[#allocation0]]
  $region61: #{_lambda_.1} parent=0
    _
  %s10 = ssub.s32 1, %s8
  %s11 = scalar_select 0, %s10, %s8
  loop: start=0, step=1, limit=6
  $region2: #{_lambda_.1} parent=0 // loop_pre_header
    _
  $region3: #{_lambda_.1} parent=0 // loop_header
    %s13 = sphi 0, %s17
    %p14 = scmp.ge.s32.totalorder %s13, 6
    %s20 = sphi 0, %s32
    %s21 = sphi 0, %s28
    %s22 = sphi 0, %s20
    %s23 = sphi 0, %s21
    %s24 = sphi 0, %s22
    %s25 = sphi 0, %s23
    %s35 = sphi 0, %s37
    %s38 = sphi 0, %s35
    %s39 = sphi 0, %s38
    %s55 = sphi 0, %s39
    %s59 = sphi 0, %s59
    %s61 = sphi 0, %s59
    %s62 = sphi 0, %s61
    %s76 = sphi 0, %s62
    %s80 = sphi 0, %s80
    %s82 = sphi 0, %s80
    %s83 = sphi 0, %s82
    %s97 = sphi 0, %s83
    %s101 = sphi 0, %s101
    %s103 = sphi 0, %s101
    %s104 = sphi 0, %s103
    %s118 = sphi 0, %s104
    %s122 = sphi 0, %s122
    %s124 = sphi 0, %s122
    %s125 = sphi 0, %s124
    %s139 = sphi 0, %s125
    %s143 = sphi 0, %s143
    %s145 = sphi 0, %s143
    %s146 = sphi 0, %s145
    %s160 = sphi 0, %s146
    %s164 = sphi 0, %s164
    %s166 = sphi 0, %s164
    %s167 = sphi 0, %s166
    %s181 = sphi 0, %s167
    %s189 = sphi 0, %s191
    %s192 = sphi 0, %s189
    %s193 = sphi 0, %s192
    %s209 = sphi 0, %s193
  $region4: #{_lambda_.1} parent=0 // loop_header_branch
    %16 = sbr.rel (%p14) target = $region8
  $region5: #{_lambda_.1} parent=0 // loop_body
    %s18 = ssub.s32 %s13, 1
    %s19 = ssub.s32 %s13, 2
    %s26 = sadd.s32 1, %s21
    %p27 = scmp.ge.s32.totalorder %s26, 2
    %s28 = scalar_select %p27, 0, %s26
    %s29 = sadd.s32 1, %s20
    %s30 = scalar_select %p27, %s29, %s20
    %p31 = scmp.ge.s32.totalorder %s30, 2
    %s32 = scalar_select %p31, 0, %s30
    %s33 = ssub.s32 %s20, %s32
    %p34 = scmp.eq.s32.totalorder %s33, 0
    %s36 = sadd.s32 %s35, 1
    %s37 = scalar_select %p34, %s35, %s36
    %p40 = pneg %p34
    %p41 = scmp.eq.s32.totalorder %s13, 3
    %p42 = por %p40, %p41
    %p43 = scmp.ne.s32.totalorder %s35, %s38
    %p44 = scmp.eq.s32.totalorder %s13, 0
    %p45 = por %p43, %p44
    %p46 = scmp.ne.s32.totalorder %s35, %s38
    %p47 = scmp.eq.s32.totalorder %s18, 3
    %p48 = por %p46, %p47
    %p49 = scmp.ne.s32.totalorder %s38, %s39
    %p50 = scmp.eq.s32.totalorder %s18, 0
    %p51 = por %p49, %p50
    %p52 = scmp.ne.s32.totalorder %s38, %s39
    %p53 = scmp.eq.s32.totalorder %s19, 3
    %p54 = por %p52, %p53
    %p56 = scmp.ne.s32.totalorder %s39, %s55
    %p57 = scmp.eq.s32.totalorder %s19, 0
    %p58 = por %p56, %p57
    %s60 = sadd.s32 %s59, 1
    %p63 = scmp.eq.s32.totalorder %s13, 3
    %p64 = scmp.ne.s32.totalorder %s59, %s61
    %p65 = scmp.eq.s32.totalorder %s13, 0
    %p66 = por %p64, %p65
    %p67 = scmp.ne.s32.totalorder %s59, %s61
    %p68 = scmp.eq.s32.totalorder %s18, 3
    %p69 = por %p67, %p68
    %p70 = scmp.ne.s32.totalorder %s61, %s62
    %p71 = scmp.eq.s32.totalorder %s18, 0
    %p72 = por %p70, %p71
    %p73 = scmp.ne.s32.totalorder %s61, %s62
    %p74 = scmp.eq.s32.totalorder %s19, 3
    %p75 = por %p73, %p74
    %p77 = scmp.ne.s32.totalorder %s62, %s76
    %p78 = scmp.eq.s32.totalorder %s19, 0
    %p79 = por %p77, %p78
    %s81 = sadd.s32 %s80, 1
    %p84 = scmp.eq.s32.totalorder %s13, 3
    %p85 = scmp.ne.s32.totalorder %s80, %s82
    %p86 = scmp.eq.s32.totalorder %s13, 0
    %p87 = por %p85, %p86
    %p88 = scmp.ne.s32.totalorder %s80, %s82
    %p89 = scmp.eq.s32.totalorder %s18, 3
    %p90 = por %p88, %p89
    %p91 = scmp.ne.s32.totalorder %s82, %s83
    %p92 = scmp.eq.s32.totalorder %s18, 0
    %p93 = por %p91, %p92
    %p94 = scmp.ne.s32.totalorder %s82, %s83
    %p95 = scmp.eq.s32.totalorder %s19, 3
    %p96 = por %p94, %p95
    %p98 = scmp.ne.s32.totalorder %s83, %s97
    %p99 = scmp.eq.s32.totalorder %s19, 0
    %p100 = por %p98, %p99
    %s102 = sadd.s32 %s101, 1
    %p105 = scmp.eq.s32.totalorder %s13, 3
    %p106 = scmp.ne.s32.totalorder %s101, %s103
    %p107 = scmp.eq.s32.totalorder %s13, 0
    %p108 = por %p106, %p107
    %p109 = scmp.ne.s32.totalorder %s101, %s103
    %p110 = scmp.eq.s32.totalorder %s18, 3
    %p111 = por %p109, %p110
    %p112 = scmp.ne.s32.totalorder %s103, %s104
    %p113 = scmp.eq.s32.totalorder %s18, 0
    %p114 = por %p112, %p113
    %p115 = scmp.ne.s32.totalorder %s103, %s104
    %p116 = scmp.eq.s32.totalorder %s19, 3
    %p117 = por %p115, %p116
    %p119 = scmp.ne.s32.totalorder %s104, %s118
    %p120 = scmp.eq.s32.totalorder %s19, 0
    %p121 = por %p119, %p120
    %s123 = sadd.s32 %s122, 1
    %p126 = scmp.eq.s32.totalorder %s13, 3
    %p127 = scmp.ne.s32.totalorder %s122, %s124
    %p128 = scmp.eq.s32.totalorder %s13, 0
    %p129 = por %p127, %p128
    %p130 = scmp.ne.s32.totalorder %s122, %s124
    %p131 = scmp.eq.s32.totalorder %s18, 3
    %p132 = por %p130, %p131
    %p133 = scmp.ne.s32.totalorder %s124, %s125
    %p134 = scmp.eq.s32.totalorder %s18, 0
    %p135 = por %p133, %p134
    %p136 = scmp.ne.s32.totalorder %s124, %s125
    %p137 = scmp.eq.s32.totalorder %s19, 3
    %p138 = por %p136, %p137
    %p140 = scmp.ne.s32.totalorder %s125, %s139
    %p141 = scmp.eq.s32.totalorder %s19, 0
    %p142 = por %p140, %p141
    %s144 = sadd.s32 %s143, 1
    %p147 = scmp.eq.s32.totalorder %s13, 3
    %p148 = scmp.ne.s32.totalorder %s143, %s145
    %p149 = scmp.eq.s32.totalorder %s13, 0
    %p150 = por %p148, %p149
    %p151 = scmp.ne.s32.totalorder %s143, %s145
    %p152 = scmp.eq.s32.totalorder %s18, 3
    %p153 = por %p151, %p152
    %p154 = scmp.ne.s32.totalorder %s145, %s146
    %p155 = scmp.eq.s32.totalorder %s18, 0
    %p156 = por %p154, %p155
    %p157 = scmp.ne.s32.totalorder %s145, %s146
    %p158 = scmp.eq.s32.totalorder %s19, 3
    %p159 = por %p157, %p158
    %p161 = scmp.ne.s32.totalorder %s146, %s160
    %p162 = scmp.eq.s32.totalorder %s19, 0
    %p163 = por %p161, %p162
    %s165 = sadd.s32 %s164, 1
    %p168 = scmp.eq.s32.totalorder %s13, 3
    %p169 = scmp.ne.s32.totalorder %s164, %s166
    %p170 = scmp.eq.s32.totalorder %s13, 0
    %p171 = por %p169, %p170
    %p172 = scmp.ne.s32.totalorder %s164, %s166
    %p173 = scmp.eq.s32.totalorder %s18, 3
    %p174 = por %p172, %p173
    %p175 = scmp.ne.s32.totalorder %s166, %s167
    %p176 = scmp.eq.s32.totalorder %s18, 0
    %p177 = por %p175, %p176
    %p178 = scmp.ne.s32.totalorder %s166, %s167
    %p179 = scmp.eq.s32.totalorder %s19, 3
    %p180 = por %p178, %p179
    %p182 = scmp.ne.s32.totalorder %s167, %s181
    %p183 = scmp.eq.s32.totalorder %s19, 0
    %p184 = por %p182, %p183
    %s185 = ssub.s32 %s20, %s32
    %s186 = ssub.s32 %s21, %s28
    %s187 = sor.u32 %s185, %s186
    %p188 = scmp.eq.s32.totalorder %s187, 0
    %s190 = sadd.s32 %s189, 1
    %s191 = scalar_select %p188, %s189, %s190
    %p194 = pneg %p188
    %p195 = scmp.eq.s32.totalorder %s13, 3
    %p196 = por %p194, %p195
    %p197 = scmp.ne.s32.totalorder %s189, %s192
    %p198 = scmp.eq.s32.totalorder %s13, 0
    %p199 = por %p197, %p198
    %p200 = scmp.ne.s32.totalorder %s189, %s192
    %p201 = scmp.eq.s32.totalorder %s18, 3
    %p202 = por %p200, %p201
    %p203 = scmp.ne.s32.totalorder %s192, %s193
    %p204 = scmp.eq.s32.totalorder %s18, 0
    %p205 = por %p203, %p204
    %p206 = scmp.ne.s32.totalorder %s192, %s193
    %p207 = scmp.eq.s32.totalorder %s19, 3
    %p208 = por %p206, %p207
    %p210 = scmp.ne.s32.totalorder %s193, %s209
    %p211 = scmp.eq.s32.totalorder %s19, 0
    %p212 = por %p210, %p211
    %p213 = scmp.le.s32.totalorder 1, %s13
    %p214 = scmp.lt.s32.totalorder %s13, 5
    %p215 = pnand %p213, %p214
    %p216 = pneg %p215
    // Predicated region
    $region9: #{_lambda_.1} parent=5 // pred_check
      _
    $region10: #{_lambda_.1} parent=5 // pred_check_branch
      %218 = sbr.rel (%p215) target = $region12
    $region11: #{_lambda_.1} parent=5 // pred_region
      %s219 = ssub.s32 %s13, 1
      // Predicated region
      $region13: #{_lambda_.1} parent=11 // pred_check
        %p220 = pneg %p72
      $region14: #{_lambda_.1} parent=11 // pred_check_branch
        %222 = sbr.rel (%p220) target = $region16
      $region15: #{_lambda_.1} parent=11 // pred_region
        _
      $region16: #{_lambda_.1} parent=11 // pred_fallthru
        _
      // Predicated region
      $region17: #{_lambda_.1} parent=11 // pred_check
        %p223 = pneg %p93
      $region18: #{_lambda_.1} parent=11 // pred_check_branch
        %225 = sbr.rel (%p223) target = $region20
      $region19: #{_lambda_.1} parent=11 // pred_region
        _
      $region20: #{_lambda_.1} parent=11 // pred_fallthru
        _
      // Predicated region
      $region21: #{_lambda_.1} parent=11 // pred_check
        %p226 = pneg %p114
      $region22: #{_lambda_.1} parent=11 // pred_check_branch
        %228 = sbr.rel (%p226) target = $region24
      $region23: #{_lambda_.1} parent=11 // pred_region
        _
      $region24: #{_lambda_.1} parent=11 // pred_fallthru
        _
      // Predicated region
      $region25: #{_lambda_.1} parent=11 // pred_check
        %p229 = pneg %p135
      $region26: #{_lambda_.1} parent=11 // pred_check_branch
        %231 = sbr.rel (%p229) target = $region28
      $region27: #{_lambda_.1} parent=11 // pred_region
        _
      $region28: #{_lambda_.1} parent=11 // pred_fallthru
        _
      // Predicated region
      $region29: #{_lambda_.1} parent=11 // pred_check
        %p232 = pneg %p156
      $region30: #{_lambda_.1} parent=11 // pred_check_branch
        %234 = sbr.rel (%p232) target = $region32
      $region31: #{_lambda_.1} parent=11 // pred_region
        _
      $region32: #{_lambda_.1} parent=11 // pred_fallthru
        _
      // Predicated region
      $region33: #{_lambda_.1} parent=11 // pred_check
        %p235 = pneg %p177
      $region34: #{_lambda_.1} parent=11 // pred_check_branch
        %237 = sbr.rel (%p235) target = $region36
      $region35: #{_lambda_.1} parent=11 // pred_region
        _
      $region36: #{_lambda_.1} parent=11 // pred_fallthru
        _
    $region12: #{_lambda_.1} parent=5 // pred_fallthru
      _
    %p238 = scmp.lt.s32.totalorder %s13, 4
    // Predicated region
    $region37: #{_lambda_.1} parent=5 // pred_check
      %p239 = pneg %p238
    $region38: #{_lambda_.1} parent=5 // pred_check_branch
      %241 = sbr.rel (%p239) target = $region40
    $region39: #{_lambda_.1} parent=5 // pred_region
      // Predicated region
      $region41: #{_lambda_.1} parent=39 // pred_check
        %p242 = pneg %p45
      $region42: #{_lambda_.1} parent=39 // pred_check_branch
        %244 = sbr.rel (%p242) target = $region44
      $region43: #{_lambda_.1} parent=39 // pred_region
        %p245 = scmp.lt.s32.totalorder %s20, 1
        %s246 = scalar_select %p245, %s20, 1
        %s247 = smul.addr %s246, 54
        %s248 = smul.addr %s247, 8
        %s249 = scalar_lea.vmem %s0, %s248
      $region44: #{_lambda_.1} parent=39 // pred_fallthru
        _
    $region40: #{_lambda_.1} parent=5 // pred_fallthru
      _
    %p250 = scmp.le.s32.totalorder 1, %s13
    %p251 = scmp.lt.s32.totalorder %s13, 5
    %p252 = pnand %p250, %p251
    %p253 = pneg %p252
    // Predicated region
    $region45: #{_lambda_.1} parent=5 // pred_check
      _
    $region46: #{_lambda_.1} parent=5 // pred_check_branch
      %255 = sbr.rel (%p252) target = $region48
    $region47: #{_lambda_.1} parent=5 // pred_region
      %s256 = ssub.s32 %s13, 1
      %p257 = scmp.lt.s32.totalorder %s22, 1
      %s258 = scalar_select %p257, %s22, 1
      %s259 = smul.addr %s258, 54
      %s260 = smul.addr %s259, 8
      %s261 = scalar_lea.vmem %s0, %s260
      %p262 = pneg %p51
      %p263 = pneg %p48
      %p264 = pneg %p72
      %p265 = pneg %p69
      %p266 = pneg %p93
      %p267 = pneg %p90
      %p268 = pneg %p114
      %p269 = pneg %p111
      %p270 = pneg %p135
      %p271 = pneg %p132
      %p272 = pneg %p156
      %p273 = pneg %p153
      %p274 = pneg %p177
      %p275 = pneg %p174
      %p276 = pneg %p205
      %p277 = pneg %p202
      %s278 = smul.u32 8, %s23
      %p279 = scmp.lt.s32.totalorder %s22, 1
      %s280 = scalar_select %p279, %s22, 1
      %p281 = scmp.lt.s32.totalorder %s278, 15
      %s282 = scalar_select %p281, %s278, 15
      %s283 = smul.addr %s282, 2
      %s284 = smul.addr %s280, 32
      %s285 = sadd.s32 %s283, %s284
      %s286 = smul.addr %s285, 8
      %s287 = scalar_lea.vmem %s7, %s286
      %p288 = scmp.lt.s32.totalorder %s22, 1
      %s289 = scalar_select %p288, %s22, 1
      %s290 = smul.addr %s289, 54
      %s291 = smul.addr %s290, 8
      %s292 = scalar_lea.vmem %s0, %s291
      %s293 = smul.u32 8, %s23
      %p294 = scmp.lt.s32.totalorder %s22, 1
      %s295 = scalar_select %p294, %s22, 1
      %p296 = scmp.lt.s32.totalorder %s293, 15
      %s297 = scalar_select %p296, %s293, 15
      %s298 = smul.addr %s297, 2
      %s299 = smul.addr %s295, 32
      %s300 = sadd.s32 %s298, %s299
      %s301 = smul.addr %s300, 8
      %s302 = scalar_lea.vmem %s7, %s301
      %s303 = smul.u32 8, %s23
      %s304 = smul.u32 %s23, 8
      %s305 = smul.u32 %s304, 24
      %s306 = scalar_lea.vmem %s292, %s305
      %v307 = vld [vmem:[%s306] sm:$0xff]
      %v308 = vld [vmem:[%s306 + $0x8] sm:$0xff]
      %v309 = vld [vmem:[%s306 + $0x10] sm:$0xff]
      %v310 = vld [vmem:[%s306 + $0x18] sm:$0xff]
      %v311 = vld [vmem:[%s306 + $0x20] sm:$0xff]
      %v312 = vld [vmem:[%s306 + $0x28] sm:$0xff]
      %v313 = vld [vmem:[%s306 + $0x30] sm:$0xff]
      %v314 = vld [vmem:[%s306 + $0x38] sm:$0xff]
      %v315 = vld [vmem:[%s306 + $0x40] sm:$0xff]
      %v316 = vld [vmem:[%s306 + $0x48] sm:$0xff]
      %v317 = vld [vmem:[%s306 + $0x50] sm:$0xff]
      %v318 = vld [vmem:[%s306 + $0x58] sm:$0xff]
      %v319 = vld [vmem:[%s306 + $0x60] sm:$0xff]
      %v320 = vld [vmem:[%s306 + $0x68] sm:$0xff]
      %v321 = vld [vmem:[%s306 + $0x70] sm:$0xff]
      %v322 = vld [vmem:[%s306 + $0x78] sm:$0xff]
      %v323 = vld [vmem:[%s306 + $0x80] sm:$0xff]
      %v324 = vld [vmem:[%s306 + $0x88] sm:$0xff]
      %v325 = vld [vmem:[%s306 + $0x90] sm:$0xff]
      %v326 = vld [vmem:[%s306 + $0x98] sm:$0xff]
      %v327 = vld [vmem:[%s306 + $0xa0] sm:$0xff]
      %v328 = vld [vmem:[%s306 + $0xa8] sm:$0xff]
      %v329 = vld [vmem:[%s306 + $0xb0] sm:$0xff]
      %v330 = vld [vmem:[%s306 + $0xb8] sm:$0xff]
      %v331 = vld [vmem:[%s306 + $0xc0] sm:$0xff]
      %v332 = vld [vmem:[%s306 + $0xc8] sm:$0xff]
      %v333 = vld [vmem:[%s306 + $0xd0] sm:$0xff]
      %v334 = vld [vmem:[%s306 + $0xd8] sm:$0xff]
      %v335 = vld [vmem:[%s306 + $0xe0] sm:$0xff]
      %v336 = vld [vmem:[%s306 + $0xe8] sm:$0xff]
      %v337 = vld [vmem:[%s1] sm:$0xff]
      %v338 = vld [vmem:[%s1 + $0x8] sm:$0xff]
      %v339 = vld [vmem:[%s2] sm:$0x1]
      %v341 = vlaneseq
      %v342 = vshrl.u32 %v341, 7
      %v343 = vsub.s32 0, %v342
      %v344 = vrot.slane %v339, %v343
      %vm346 = vcmask 130048
      %v348 = vsel %vm346, %v307, 0
      %v351 = vsel %vm346, %v308, 0
      %v354 = vsel %vm346, %v309, 0
      %v357 = vsel %vm346, %v310, 0
      %v360 = vsel %vm346, %v311, 0
      %v363 = vsel %vm346, %v312, 0
      %v366 = vsel %vm346, %v313, 0
      %v369 = vsel %vm346, %v314, 0
      %v372 = vsel %vm346, %v315, 0
      %v375 = vsel %vm346, %v316, 0
      %v378 = vsel %vm346, %v317, 0
      %v381 = vsel %vm346, %v318, 0
      %v384 = vsel %vm346, %v319, 0
      %v387 = vsel %vm346, %v320, 0
      %v390 = vsel %vm346, %v321, 0
      %v393 = vsel %vm346, %v322, 0
      %v396 = vsel %vm346, %v323, 0
      %v399 = vsel %vm346, %v324, 0
      %v402 = vsel %vm346, %v325, 0
      %v405 = vsel %vm346, %v326, 0
      %v408 = vsel %vm346, %v327, 0
      %v411 = vsel %vm346, %v328, 0
      %v414 = vsel %vm346, %v329, 0
      %v417 = vsel %vm346, %v330, 0
      %v420 = vsel %vm346, %v331, 0
      %v423 = vsel %vm346, %v332, 0
      %v426 = vsel %vm346, %v333, 0
      %v429 = vsel %vm346, %v334, 0
      %v432 = vsel %vm346, %v335, 0
      %v435 = vsel %vm346, %v336, 0
      %437 = vmatprep.subr.mxu0 0.0
      %438 = vmatpush1.msra.mxu0 %v337
      %439 = vmatprep.subr.mxu0 0.0
      %440 = vmatpush1.msra.mxu0 %v338
      %441 = vmatprep.subr.mxu0 0.0
      %442 = vmatpush1.msra.mxu0 0.0
      %443 = vmatprep.subr.mxu0 0.0
      %444 = vmatpush1.msra.mxu0 0.0
      %445 = vmatprep.subr.mxu0 0.0
      %446 = vmatpush1.msra.mxu0 0.0
      %447 = vmatprep.subr.mxu0 0.0
      %448 = vmatpush1.msra.mxu0 0.0
      %449 = vmatprep.subr.mxu0 0.0
      %450 = vmatpush1.msra.mxu0 0.0
      %451 = vmatprep.subr.mxu0 0.0
      %452 = vmatpush1.msra.mxu0 0.0
      %453 = vmatprep.subr.mxu0 0.0
      %454 = vmatpush1.msra.mxu0 0.0
      %455 = vmatprep.subr.mxu0 0.0
      %456 = vmatpush1.msra.mxu0 0.0
      %457 = vmatprep.subr.mxu0 0.0
      %458 = vmatpush1.msra.mxu0 0.0
      %459 = vmatprep.subr.mxu0 0.0
      %460 = vmatpush1.msra.mxu0 0.0
      %461 = vmatprep.subr.mxu0 0.0
      %462 = vmatpush1.msra.mxu0 0.0
      %463 = vmatprep.subr.mxu0 0.0
      %464 = vmatpush1.msra.mxu0 0.0
      %465 = vmatprep.subr.mxu0 0.0
      %466 = vmatpush1.msra.mxu0 0.0
      %467 = vmatprep.subr.mxu0 0.0
      %468 = vmatpush1.msra.mxu0 0.0
      %469 = vmatprep.subr.mxu0 0.0
      %470 = vmatpush1.msra.mxu0 0.0
      %471 = vmatprep.subr.mxu0 0.0
      %472 = vmatpush1.msra.mxu0 0.0
      %473 = vmatprep.subr.mxu0 0.0
      %474 = vmatpush1.msra.mxu0 0.0
      %475 = vmatprep.subr.mxu0 0.0
      %476 = vmatpush1.msra.mxu0 0.0
      %477 = vmatprep.subr.mxu0 0.0
      %478 = vmatpush1.msra.mxu0 0.0
      %479 = vmatprep.subr.mxu0 0.0
      %480 = vmatpush1.msra.mxu0 0.0
      %481 = vmatprep.subr.mxu0 0.0
      %482 = vmatpush1.msra.mxu0 0.0
      %483 = vmatprep.subr.mxu0 0.0
      %484 = vmatpush1.msra.mxu0 0.0
      %485 = vmatprep.subr.mxu0 0.0
      %486 = vmatpush1.msra.mxu0 0.0
      %487 = vmatprep.subr.mxu0 0.0
      %488 = vmatpush1.msra.mxu0 0.0
      %489 = vmatprep.subr.mxu0 0.0
      %490 = vmatpush1.msra.mxu0 0.0
      %491 = vmatprep.subr.mxu0 0.0
      %492 = vmatpush1.msra.mxu0 0.0
      %493 = vmatprep.subr.mxu0 0.0
      %494 = vmatpush1.msra.mxu0 0.0
      %495 = vmatprep.subr.mxu0 0.0
      %496 = vmatpush1.msra.mxu0 0.0
      %497 = vmatprep.subr.mxu0 0.0
      %498 = vmatpush1.msra.mxu0 0.0
      %499 = vmatprep.subr.mxu0 0.0
      %500 = vmatpush1.msra.mxu0 0.0
      %501 = vmatprep.mubr.f32.mxu0 0.0
      %502 = vmatmul.mubr.f32.gmra.mrb[0].mxu0 %v348
      %v503 = vpop.f32.mrb[0].mxu0
      %v504 = vadd.f32 %v344, %v503
      %v505 = vpop.f32.mrb[0].mxu0
      %506 = vmatprep.mubr.f32.mxu0 0.0
      %507 = vmatmul.mubr.f32.gmra.mrb[0].mxu0 %v351
      %v508 = vpop.f32.mrb[0].mxu0
      %v509 = vadd.f32 %v344, %v508
      %v510 = vpop.f32.mrb[0].mxu0
      %511 = vmatprep.mubr.f32.mxu0 0.0
      %512 = vmatmul.mubr.f32.gmra.mrb[0].mxu0 %v354
      %v513 = vpop.f32.mrb[0].mxu0
      %v514 = vadd.f32 %v344, %v513
      %v515 = vpop.f32.mrb[0].mxu0
      %516 = vmatprep.mubr.f32.mxu0 0.0
      %517 = vmatmul.mubr.f32.gmra.mrb[0].mxu0 %v357
      %v518 = vpop.f32.mrb[0].mxu0
      %v519 = vadd.f32 %v344, %v518
      %v520 = vpop.f32.mrb[0].mxu0
      %521 = vmatprep.mubr.f32.mxu0 0.0
      %522 = vmatmul.mubr.f32.gmra.mrb[0].mxu0 %v360
      %v523 = vpop.f32.mrb[0].mxu0
      %v524 = vadd.f32 %v344, %v523
      %v525 = vpop.f32.mrb[0].mxu0
      %526 = vmatprep.mubr.f32.mxu0 0.0
      %527 = vmatmul.mubr.f32.gmra.mrb[0].mxu0 %v363
      %v528 = vpop.f32.mrb[0].mxu0
      %v529 = vadd.f32 %v344, %v528
      %v530 = vpop.f32.mrb[0].mxu0
      %531 = vmatprep.mubr.f32.mxu0 0.0
      %532 = vmatmul.mubr.f32.gmra.mrb[0].mxu0 %v366
      %v533 = vpop.f32.mrb[0].mxu0
      %v534 = vadd.f32 %v344, %v533
      %v535 = vpop.f32.mrb[0].mxu0
      %536 = vmatprep.mubr.f32.mxu0 0.0
      %537 = vmatmul.mubr.f32.gmra.mrb[0].mxu0 %v369
      %v538 = vpop.f32.mrb[0].mxu0
      %v539 = vadd.f32 %v344, %v538
      %v540 = vpop.f32.mrb[0].mxu0
      %541 = vmatprep.mubr.f32.mxu0 0.0
      %542 = vmatmul.mubr.f32.gmra.mrb[0].mxu0 %v372
      %v543 = vpop.f32.mrb[0].mxu0
      %v544 = vadd.f32 %v344, %v543
      %v545 = vpop.f32.mrb[0].mxu0
      %546 = vmatprep.mubr.f32.mxu0 0.0
      %547 = vmatmul.mubr.f32.gmra.mrb[0].mxu0 %v375
      %v548 = vpop.f32.mrb[0].mxu0
      %v549 = vadd.f32 %v344, %v548
      %v550 = vpop.f32.mrb[0].mxu0
      %551 = vmatprep.mubr.f32.mxu0 0.0
      %552 = vmatmul.mubr.f32.gmra.mrb[0].mxu0 %v378
      %v553 = vpop.f32.mrb[0].mxu0
      %v554 = vadd.f32 %v344, %v553
      %v555 = vpop.f32.mrb[0].mxu0
      %556 = vmatprep.mubr.f32.mxu0 0.0
      %557 = vmatmul.mubr.f32.gmra.mrb[0].mxu0 %v381
      %v558 = vpop.f32.mrb[0].mxu0
      %v559 = vadd.f32 %v344, %v558
      %v560 = vpop.f32.mrb[0].mxu0
      %561 = vmatprep.mubr.f32.mxu0 0.0
      %562 = vmatmul.mubr.f32.gmra.mrb[0].mxu0 %v384
      %v563 = vpop.f32.mrb[0].mxu0
      %v564 = vadd.f32 %v344, %v563
      %v565 = vpop.f32.mrb[0].mxu0
      %566 = vmatprep.mubr.f32.mxu0 0.0
      %567 = vmatmul.mubr.f32.gmra.mrb[0].mxu0 %v387
      %v568 = vpop.f32.mrb[0].mxu0
      %v569 = vadd.f32 %v344, %v568
      %v570 = vpop.f32.mrb[0].mxu0
      %571 = vmatprep.mubr.f32.mxu0 0.0
      %572 = vmatmul.mubr.f32.gmra.mrb[0].mxu0 %v390
      %v573 = vpop.f32.mrb[0].mxu0
      %v574 = vadd.f32 %v344, %v573
      %v575 = vpop.f32.mrb[0].mxu0
      %576 = vmatprep.mubr.f32.mxu0 0.0
      %577 = vmatmul.mubr.f32.gmra.mrb[0].mxu0 %v393
      %v578 = vpop.f32.mrb[0].mxu0
      %v579 = vadd.f32 %v344, %v578
      %v580 = vpop.f32.mrb[0].mxu0
      %581 = vmatprep.mubr.f32.mxu0 0.0
      %582 = vmatmul.mubr.f32.gmra.mrb[0].mxu0 %v396
      %v583 = vpop.f32.mrb[0].mxu0
      %v584 = vadd.f32 %v344, %v583
      %v585 = vpop.f32.mrb[0].mxu0
      %586 = vmatprep.mubr.f32.mxu0 0.0
      %587 = vmatmul.mubr.f32.gmra.mrb[0].mxu0 %v399
      %v588 = vpop.f32.mrb[0].mxu0
      %v589 = vadd.f32 %v344, %v588
      %v590 = vpop.f32.mrb[0].mxu0
      %591 = vmatprep.mubr.f32.mxu0 0.0
      %592 = vmatmul.mubr.f32.gmra.mrb[0].mxu0 %v402
      %v593 = vpop.f32.mrb[0].mxu0
      %v594 = vadd.f32 %v344, %v593
      %v595 = vpop.f32.mrb[0].mxu0
      %596 = vmatprep.mubr.f32.mxu0 0.0
      %597 = vmatmul.mubr.f32.gmra.mrb[0].mxu0 %v405
      %v598 = vpop.f32.mrb[0].mxu0
      %v599 = vadd.f32 %v344, %v598
      %v600 = vpop.f32.mrb[0].mxu0
      %601 = vmatprep.mubr.f32.mxu0 0.0
      %602 = vmatmul.mubr.f32.gmra.mrb[0].mxu0 %v408
      %v603 = vpop.f32.mrb[0].mxu0
      %v604 = vadd.f32 %v344, %v603
      %v605 = vpop.f32.mrb[0].mxu0
      %606 = vmatprep.mubr.f32.mxu0 0.0
      %607 = vmatmul.mubr.f32.gmra.mrb[0].mxu0 %v411
      %v608 = vpop.f32.mrb[0].mxu0
      %v609 = vadd.f32 %v344, %v608
      %v610 = vpop.f32.mrb[0].mxu0
      %611 = vmatprep.mubr.f32.mxu0 0.0
      %612 = vmatmul.mubr.f32.gmra.mrb[0].mxu0 %v414
      %v613 = vpop.f32.mrb[0].mxu0
      %v614 = vadd.f32 %v344, %v613
      %v615 = vpop.f32.mrb[0].mxu0
      %616 = vmatprep.mubr.f32.mxu0 0.0
      %617 = vmatmul.mubr.f32.gmra.mrb[0].mxu0 %v417
      %v618 = vpop.f32.mrb[0].mxu0
      %v619 = vadd.f32 %v344, %v618
      %v620 = vpop.f32.mrb[0].mxu0
      %621 = vmatprep.mubr.f32.mxu0 0.0
      %622 = vmatmul.mubr.f32.gmra.mrb[0].mxu0 %v420
      %v623 = vpop.f32.mrb[0].mxu0
      %v624 = vadd.f32 %v344, %v623
      %v625 = vpop.f32.mrb[0].mxu0
      %626 = vmatprep.mubr.f32.mxu0 0.0
      %627 = vmatmul.mubr.f32.gmra.mrb[0].mxu0 %v423
      %v628 = vpop.f32.mrb[0].mxu0
      %v629 = vadd.f32 %v344, %v628
      %v630 = vpop.f32.mrb[0].mxu0
      %631 = vmatprep.mubr.f32.mxu0 0.0
      %632 = vmatmul.mubr.f32.gmra.mrb[0].mxu0 %v426
      %v633 = vpop.f32.mrb[0].mxu0
      %v634 = vadd.f32 %v344, %v633
      %v635 = vpop.f32.mrb[0].mxu0
      %636 = vmatprep.mubr.f32.mxu0 0.0
      %637 = vmatmul.mubr.f32.gmra.mrb[0].mxu0 %v429
      %v638 = vpop.f32.mrb[0].mxu0
      %v639 = vadd.f32 %v344, %v638
      %v640 = vpop.f32.mrb[0].mxu0
      %641 = vmatprep.mubr.f32.mxu0 0.0
      %642 = vmatmul.mubr.f32.gmra.mrb[0].mxu0 %v432
      %v643 = vpop.f32.mrb[0].mxu0
      %v644 = vadd.f32 %v344, %v643
      %v645 = vpop.f32.mrb[0].mxu0
      %646 = vmatprep.mubr.f32.mxu0 0.0
      %647 = vmatmul.mubr.f32.gmra.mrb[0].mxu0 %v435
      %v648 = vpop.f32.mrb[0].mxu0
      %v649 = vadd.f32 %v344, %v648
      %v650 = vpop.f32.mrb[0].mxu0
      %651 = vdwg.mxu0
      %v652 = vmax.f32 %v504, 0.0
      %v653 = vmax.f32 %v509, 0.0
      %v654 = vmax.f32 %v514, 0.0
      %v655 = vmax.f32 %v519, 0.0
      %v656 = vmax.f32 %v524, 0.0
      %v657 = vmax.f32 %v529, 0.0
      %v658 = vmax.f32 %v534, 0.0
      %v659 = vmax.f32 %v539, 0.0
      %v660 = vmax.f32 %v544, 0.0
      %v661 = vmax.f32 %v549, 0.0
      %v662 = vmax.f32 %v554, 0.0
      %v663 = vmax.f32 %v559, 0.0
      %v664 = vmax.f32 %v564, 0.0
      %v665 = vmax.f32 %v569, 0.0
      %v666 = vmax.f32 %v574, 0.0
      %v667 = vmax.f32 %v579, 0.0
      %v668 = vmax.f32 %v584, 0.0
      %v669 = vmax.f32 %v589, 0.0
      %v670 = vmax.f32 %v594, 0.0
      %v671 = vmax.f32 %v599, 0.0
      %v672 = vmax.f32 %v604, 0.0
      %v673 = vmax.f32 %v609, 0.0
      %v674 = vmax.f32 %v614, 0.0
      %v675 = vmax.f32 %v619, 0.0
      %v676 = vmax.f32 %v624, 0.0
      %v677 = vmax.f32 %v629, 0.0
      %v678 = vmax.f32 %v634, 0.0
      %v679 = vmax.f32 %v639, 0.0
      %v680 = vmax.f32 %v644, 0.0
      %v681 = vmax.f32 %v649, 0.0
      %v682 = vlaneseq
      %v683 = vshrl.u32 %v682, 7
      %v684 = vadd.s32 %v683, 8
      %v685 = vadd.s32 %v683, 16
      %s686 = ssub.s32 %s304, 1
      %v687 = vstv %s686
      %v688 = vadd.s32 %v687, 1
      %v689 = vadd.s32 %v687, 2
      %v690 = vadd.s32 %v687, 3
      %v691 = vadd.s32 %v687, 4
      %v692 = vadd.s32 %v687, 5
      %v693 = vadd.s32 %v687, 6
      %v694 = vadd.s32 %v687, 7
      %v695 = vadd.s32 %v687, 8
      %v696 = vadd.s32 %v687, 9
      %vm697 = vcmp.ge.s32.totalorder %v687, 0
      %vm698 = vcmp.ge.s32.totalorder %v688, 0
      %vm699 = vcmp.ge.s32.totalorder %v689, 0
      %vm700 = vcmp.ge.s32.totalorder %v690, 0
      %vm701 = vcmp.ge.s32.totalorder %v691, 0
      %vm702 = vcmp.ge.s32.totalorder %v692, 0
      %vm703 = vcmp.ge.s32.totalorder %v693, 0
      %vm704 = vcmp.ge.s32.totalorder %v694, 0
      %vm705 = vcmp.ge.s32.totalorder %v695, 0
      %vm706 = vcmp.ge.s32.totalorder %v696, 0
      %vm707 = vcmp.lt.s32.totalorder %v687, 16
      %vm708 = vcmp.lt.s32.totalorder %v688, 16
      %vm709 = vcmp.lt.s32.totalorder %v689, 16
      %vm710 = vcmp.lt.s32.totalorder %v690, 16
      %vm711 = vcmp.lt.s32.totalorder %v691, 16
      %vm712 = vcmp.lt.s32.totalorder %v692, 16
      %vm713 = vcmp.lt.s32.totalorder %v693, 16
      %vm714 = vcmp.lt.s32.totalorder %v694, 16
      %vm715 = vcmp.lt.s32.totalorder %v695, 16
      %vm716 = vcmp.lt.s32.totalorder %v696, 16
      %vm717 = vmand %vm697, %vm707
      %vm718 = vmand %vm698, %vm708
      %vm719 = vmand %vm699, %vm709
      %vm720 = vmand %vm700, %vm710
      %vm721 = vmand %vm701, %vm711
      %vm722 = vmand %vm702, %vm712
      %vm723 = vmand %vm703, %vm713
      %vm724 = vmand %vm704, %vm714
      %vm725 = vmand %vm705, %vm715
      %vm726 = vmand %vm706, %vm716
      %vm727 = vcmp.ge.s32.totalorder %v683, 1
      %vm728 = vcmp.ge.s32.totalorder %v684, 1
      %vm729 = vcmp.ge.s32.totalorder %v685, 1
      %vm730 = vmand %vm717, %vm727
      %vm731 = vmand %vm717, %vm728
      %vm732 = vmand %vm717, %vm729
      %vm733 = vmand %vm718, %vm727
      %vm734 = vmand %vm718, %vm728
      %vm735 = vmand %vm718, %vm729
      %vm736 = vmand %vm719, %vm727
      %vm737 = vmand %vm719, %vm728
      %vm738 = vmand %vm719, %vm729
      %vm739 = vmand %vm720, %vm727
      %vm740 = vmand %vm720, %vm728
      %vm741 = vmand %vm720, %vm729
      %vm742 = vmand %vm721, %vm727
      %vm743 = vmand %vm721, %vm728
      %vm744 = vmand %vm721, %vm729
      %vm745 = vmand %vm722, %vm727
      %vm746 = vmand %vm722, %vm728
      %vm747 = vmand %vm722, %vm729
      %vm748 = vmand %vm723, %vm727
      %vm749 = vmand %vm723, %vm728
      %vm750 = vmand %vm723, %vm729
      %vm751 = vmand %vm724, %vm727
      %vm752 = vmand %vm724, %vm728
      %vm753 = vmand %vm724, %vm729
      %vm754 = vmand %vm725, %vm727
      %vm755 = vmand %vm725, %vm728
      %vm756 = vmand %vm725, %vm729
      %vm757 = vmand %vm726, %vm727
      %vm758 = vmand %vm726, %vm728
      %vm759 = vmand %vm726, %vm729
      %vm760 = vcmp.lt.s32.totalorder %v683, 17
      %vm761 = vcmp.lt.s32.totalorder %v684, 17
      %vm762 = vcmp.lt.s32.totalorder %v685, 17
      %vm763 = vmand %vm730, %vm760
      %vm764 = vmand %vm731, %vm761
      %vm765 = vmand %vm732, %vm762
      %vm766 = vmand %vm733, %vm760
      %vm767 = vmand %vm734, %vm761
      %vm768 = vmand %vm735, %vm762
      %vm769 = vmand %vm736, %vm760
      %vm770 = vmand %vm737, %vm761
      %vm771 = vmand %vm738, %vm762
      %vm772 = vmand %vm739, %vm760
      %vm773 = vmand %vm740, %vm761
      %vm774 = vmand %vm741, %vm762
      %vm775 = vmand %vm742, %vm760
      %vm776 = vmand %vm743, %vm761
      %vm777 = vmand %vm744, %vm762
      %vm778 = vmand %vm745, %vm760
      %vm779 = vmand %vm746, %vm761
      %vm780 = vmand %vm747, %vm762
      %vm781 = vmand %vm748, %vm760
      %vm782 = vmand %vm749, %vm761
      %vm783 = vmand %vm750, %vm762
      %vm784 = vmand %vm751, %vm760
      %vm785 = vmand %vm752, %vm761
      %vm786 = vmand %vm753, %vm762
      %vm787 = vmand %vm754, %vm760
      %vm788 = vmand %vm755, %vm761
      %vm789 = vmand %vm756, %vm762
      %vm790 = vmand %vm757, %vm760
      %vm791 = vmand %vm758, %vm761
      %vm792 = vmand %vm759, %vm762
      %v793 = vsel %vm763, %v652, 0.0
      %v794 = vsel %vm764, %v653, 0.0
      %v795 = vsel %vm765, %v654, 0.0
      %v796 = vsel %vm766, %v655, 0.0
      %v797 = vsel %vm767, %v656, 0.0
      %v798 = vsel %vm768, %v657, 0.0
      %v799 = vsel %vm769, %v658, 0.0
      %v800 = vsel %vm770, %v659, 0.0
      %v801 = vsel %vm771, %v660, 0.0
      %v802 = vsel %vm772, %v661, 0.0
      %v803 = vsel %vm773, %v662, 0.0
      %v804 = vsel %vm774, %v663, 0.0
      %v805 = vsel %vm775, %v664, 0.0
      %v806 = vsel %vm776, %v665, 0.0
      %v807 = vsel %vm777, %v666, 0.0
      %v808 = vsel %vm778, %v667, 0.0
      %v809 = vsel %vm779, %v668, 0.0
      %v810 = vsel %vm780, %v669, 0.0
      %v811 = vsel %vm781, %v670, 0.0
      %v812 = vsel %vm782, %v671, 0.0
      %v813 = vsel %vm783, %v672, 0.0
      %v814 = vsel %vm784, %v673, 0.0
      %v815 = vsel %vm785, %v674, 0.0
      %v816 = vsel %vm786, %v675, 0.0
      %v817 = vsel %vm787, %v676, 0.0
      %v818 = vsel %vm788, %v677, 0.0
      %v819 = vsel %vm789, %v678, 0.0
      %v820 = vsel %vm790, %v679, 0.0
      %v821 = vsel %vm791, %v680, 0.0
      %v822 = vsel %vm792, %v681, 0.0
      %vm823 = vcmask 261120
      %824 = vst.msk [vmem:[#allocation2] sm:$0xff] %vm823, %v793
      %825 = vst.msk [vmem:[#allocation2 + $0x8] sm:$0xff] %vm823, %v794
      %826 = vst.msk [vmem:[#allocation2 + $0x10] sm:$0xff] %vm823, %v795
      %827 = vst.msk [vmem:[#allocation2 + $0x18] sm:$0xff] %vm823, %v796
      %828 = vst.msk [vmem:[#allocation2 + $0x20] sm:$0xff] %vm823, %v797
      %829 = vst.msk [vmem:[#allocation2 + $0x28] sm:$0xff] %vm823, %v798
      %830 = vst.msk [vmem:[#allocation2 + $0x30] sm:$0xff] %vm823, %v799
      %831 = vst.msk [vmem:[#allocation2 + $0x38] sm:$0xff] %vm823, %v800
      %832 = vst.msk [vmem:[#allocation2 + $0x40] sm:$0xff] %vm823, %v801
      %833 = vst.msk [vmem:[#allocation2 + $0x48] sm:$0xff] %vm823, %v802
      %834 = vst.msk [vmem:[#allocation2 + $0x50] sm:$0xff] %vm823, %v803
      %835 = vst.msk [vmem:[#allocation2 + $0x58] sm:$0xff] %vm823, %v804
      %836 = vst.msk [vmem:[#allocation2 + $0x60] sm:$0xff] %vm823, %v805
      %837 = vst.msk [vmem:[#allocation2 + $0x68] sm:$0xff] %vm823, %v806
      %838 = vst.msk [vmem:[#allocation2 + $0x70] sm:$0xff] %vm823, %v807
      %839 = vst.msk [vmem:[#allocation2 + $0x78] sm:$0xff] %vm823, %v808
      %840 = vst.msk [vmem:[#allocation2 + $0x80] sm:$0xff] %vm823, %v809
      %841 = vst.msk [vmem:[#allocation2 + $0x88] sm:$0xff] %vm823, %v810
      %842 = vst.msk [vmem:[#allocation2 + $0x90] sm:$0xff] %vm823, %v811
      %843 = vst.msk [vmem:[#allocation2 + $0x98] sm:$0xff] %vm823, %v812
      %844 = vst.msk [vmem:[#allocation2 + $0xa0] sm:$0xff] %vm823, %v813
      %845 = vst.msk [vmem:[#allocation2 + $0xa8] sm:$0xff] %vm823, %v814
      %846 = vst.msk [vmem:[#allocation2 + $0xb0] sm:$0xff] %vm823, %v815
      %847 = vst.msk [vmem:[#allocation2 + $0xb8] sm:$0xff] %vm823, %v816
      %848 = vst.msk [vmem:[#allocation2 + $0xc0] sm:$0xff] %vm823, %v817
      %849 = vst.msk [vmem:[#allocation2 + $0xc8] sm:$0xff] %vm823, %v818
      %850 = vst.msk [vmem:[#allocation2 + $0xd0] sm:$0xff] %vm823, %v819
      %851 = vst.msk [vmem:[#allocation2 + $0xd8] sm:$0xff] %vm823, %v820
      %852 = vst.msk [vmem:[#allocation2 + $0xe0] sm:$0xff] %vm823, %v821
      %853 = vst.msk [vmem:[#allocation2 + $0xe8] sm:$0xff] %vm823, %v822
      %v854 = vld [vmem:[#allocation2] sm:$0xff]
      %v855 = vld [vmem:[#allocation2 + $0x8] sm:$0xff]
      %v856 = vld [vmem:[#allocation2 + $0x18] sm:$0xff]
      %v857 = vld [vmem:[#allocation2 + $0x20] sm:$0xff]
      %v858 = vld [vmem:[#allocation2 + $0x30] sm:$0xff]
      %v859 = vld [vmem:[#allocation2 + $0x38] sm:$0xff]
      %v860 = vld [vmem:[#allocation2 + $0x48] sm:$0xff]
      %v861 = vld [vmem:[#allocation2 + $0x50] sm:$0xff]
      %v862 = vld [vmem:[#allocation2 + $0x60] sm:$0xff]
      %v863 = vld [vmem:[#allocation2 + $0x68] sm:$0xff]
      %v864 = vld [vmem:[#allocation2 + $0x78] sm:$0xff]
      %v865 = vld [vmem:[#allocation2 + $0x80] sm:$0xff]
      %v866 = vld [vmem:[#allocation2 + $0x90] sm:$0xff]
      %v867 = vld [vmem:[#allocation2 + $0x98] sm:$0xff]
      %v868 = vld [vmem:[#allocation2 + $0xa8] sm:$0xff]
      %v869 = vld [vmem:[#allocation2 + $0xb0] sm:$0xff]
      %v870 = vld [vmem:[%s3] sm:$0x1]
      %v871 = vlaneseq
      %v872 = vshrl.u32 %v871, 7
      %v873 = vsub.s32 0, %v872
      %v874 = vrot.slane %v870, %v873
      %v875 = vmul.f32 %v854, %v874
      %v876 = vmul.f32 %v855, %v874
      %v877 = vmul.f32 %v856, %v874
      %v878 = vmul.f32 %v857, %v874
      %v879 = vmul.f32 %v858, %v874
      %v880 = vmul.f32 %v859, %v874
      %v881 = vmul.f32 %v860, %v874
      %v882 = vmul.f32 %v861, %v874
      %v883 = vmul.f32 %v862, %v874
      %v884 = vmul.f32 %v863, %v874
      %v885 = vmul.f32 %v864, %v874
      %v886 = vmul.f32 %v865, %v874
      %v887 = vmul.f32 %v866, %v874
      %v888 = vmul.f32 %v867, %v874
      %v889 = vmul.f32 %v868, %v874
      %v890 = vmul.f32 %v869, %v874
      %v891 = vadd.f32 %v875, 0.0
      %v892 = vadd.f32 %v876, 0.0
      %v893 = vadd.f32 %v877, 0.0
      %v894 = vadd.f32 %v878, 0.0
      %v895 = vadd.f32 %v879, 0.0
      %v896 = vadd.f32 %v880, 0.0
      %v897 = vadd.f32 %v881, 0.0
      %v898 = vadd.f32 %v882, 0.0
      %v899 = vadd.f32 %v883, 0.0
      %v900 = vadd.f32 %v884, 0.0
      %v901 = vadd.f32 %v885, 0.0
      %v902 = vadd.f32 %v886, 0.0
      %v903 = vadd.f32 %v887, 0.0
      %v904 = vadd.f32 %v888, 0.0
      %v905 = vadd.f32 %v889, 0.0
      %v906 = vadd.f32 %v890, 0.0
      %v907 = vld [vmem:[#allocation2 + $0x1] sm:$0xff]
      %v908 = vld [vmem:[#allocation2 + $0x9] sm:$0xff]
      %v909 = vld [vmem:[#allocation2 + $0x19] sm:$0xff]
      %v910 = vld [vmem:[#allocation2 + $0x21] sm:$0xff]
      %v911 = vld [vmem:[#allocation2 + $0x31] sm:$0xff]
      %v912 = vld [vmem:[#allocation2 + $0x39] sm:$0xff]
      %v913 = vld [vmem:[#allocation2 + $0x49] sm:$0xff]
      %v914 = vld [vmem:[#allocation2 + $0x51] sm:$0xff]
      %v915 = vld [vmem:[#allocation2 + $0x61] sm:$0xff]
      %v916 = vld [vmem:[#allocation2 + $0x69] sm:$0xff]
      %v917 = vld [vmem:[#allocation2 + $0x79] sm:$0xff]
      %v918 = vld [vmem:[#allocation2 + $0x81] sm:$0xff]
      %v919 = vld [vmem:[#allocation2 + $0x91] sm:$0xff]
      %v920 = vld [vmem:[#allocation2 + $0x99] sm:$0xff]
      %v921 = vld [vmem:[#allocation2 + $0xa9] sm:$0xff]
      %v922 = vld [vmem:[#allocation2 + $0xb1] sm:$0xff]
      %v923 = vld [vmem:[%s3 + $0x1] sm:$0x1]
      %v924 = vlaneseq
      %v925 = vshrl.u32 %v924, 7
      %v926 = vsub.s32 0, %v925
      %v927 = vrot.slane %v923, %v926
      %v928 = vmul.f32 %v907, %v927
      %v929 = vmul.f32 %v908, %v927
      %v930 = vmul.f32 %v909, %v927
      %v931 = vmul.f32 %v910, %v927
      %v932 = vmul.f32 %v911, %v927
      %v933 = vmul.f32 %v912, %v927
      %v934 = vmul.f32 %v913, %v927
      %v935 = vmul.f32 %v914, %v927
      %v936 = vmul.f32 %v915, %v927
      %v937 = vmul.f32 %v916, %v927
      %v938 = vmul.f32 %v917, %v927
      %v939 = vmul.f32 %v918, %v927
      %v940 = vmul.f32 %v919, %v927
      %v941 = vmul.f32 %v920, %v927
      %v942 = vmul.f32 %v921, %v927
      %v943 = vmul.f32 %v922, %v927
      %v944 = vadd.f32 %v891, %v928
      %v945 = vadd.f32 %v892, %v929
      %v946 = vadd.f32 %v893, %v930
      %v947 = vadd.f32 %v894, %v931
      %v948 = vadd.f32 %v895, %v932
      %v949 = vadd.f32 %v896, %v933
      %v950 = vadd.f32 %v897, %v934
      %v951 = vadd.f32 %v898, %v935
      %v952 = vadd.f32 %v899, %v936
      %v953 = vadd.f32 %v900, %v937
      %v954 = vadd.f32 %v901, %v938
      %v955 = vadd.f32 %v902, %v939
      %v956 = vadd.f32 %v903, %v940
      %v957 = vadd.f32 %v904, %v941
      %v958 = vadd.f32 %v905, %v942
      %v959 = vadd.f32 %v906, %v943
      %v960 = vld [vmem:[#allocation2 + $0x2] sm:$0xff]
      %v961 = vld [vmem:[#allocation2 + $0xa] sm:$0xff]
      %v962 = vld [vmem:[#allocation2 + $0x1a] sm:$0xff]
      %v963 = vld [vmem:[#allocation2 + $0x22] sm:$0xff]
      %v964 = vld [vmem:[#allocation2 + $0x32] sm:$0xff]
      %v965 = vld [vmem:[#allocation2 + $0x3a] sm:$0xff]
      %v966 = vld [vmem:[#allocation2 + $0x4a] sm:$0xff]
      %v967 = vld [vmem:[#allocation2 + $0x52] sm:$0xff]
      %v968 = vld [vmem:[#allocation2 + $0x62] sm:$0xff]
      %v969 = vld [vmem:[#allocation2 + $0x6a] sm:$0xff]
      %v970 = vld [vmem:[#allocation2 + $0x7a] sm:$0xff]
      %v971 = vld [vmem:[#allocation2 + $0x82] sm:$0xff]
      %v972 = vld [vmem:[#allocation2 + $0x92] sm:$0xff]
      %v973 = vld [vmem:[#allocation2 + $0x9a] sm:$0xff]
      %v974 = vld [vmem:[#allocation2 + $0xaa] sm:$0xff]
      %v975 = vld [vmem:[#allocation2 + $0xb2] sm:$0xff]
      %v976 = vld [vmem:[%s3 + $0x2] sm:$0x1]
      %v977 = vlaneseq
      %v978 = vshrl.u32 %v977, 7
      %v979 = vsub.s32 0, %v978
      %v980 = vrot.slane %v976, %v979
      %v981 = vmul.f32 %v960, %v980
      %v982 = vmul.f32 %v961, %v980
      %v983 = vmul.f32 %v962, %v980
      %v984 = vmul.f32 %v963, %v980
      %v985 = vmul.f32 %v964, %v980
      %v986 = vmul.f32 %v965, %v980
      %v987 = vmul.f32 %v966, %v980
      %v988 = vmul.f32 %v967, %v980
      %v989 = vmul.f32 %v968, %v980
      %v990 = vmul.f32 %v969, %v980
      %v991 = vmul.f32 %v970, %v980
      %v992 = vmul.f32 %v971, %v980
      %v993 = vmul.f32 %v972, %v980
      %v994 = vmul.f32 %v973, %v980
      %v995 = vmul.f32 %v974, %v980
      %v996 = vmul.f32 %v975, %v980
      %v997 = vadd.f32 %v944, %v981
      %v998 = vadd.f32 %v945, %v982
      %v999 = vadd.f32 %v946, %v983
      %v1000 = vadd.f32 %v947, %v984
      %v1001 = vadd.f32 %v948, %v985
      %v1002 = vadd.f32 %v949, %v986
      %v1003 = vadd.f32 %v950, %v987
      %v1004 = vadd.f32 %v951, %v988
      %v1005 = vadd.f32 %v952, %v989
      %v1006 = vadd.f32 %v953, %v990
      %v1007 = vadd.f32 %v954, %v991
      %v1008 = vadd.f32 %v955, %v992
      %v1009 = vadd.f32 %v956, %v993
      %v1010 = vadd.f32 %v957, %v994
      %v1011 = vadd.f32 %v958, %v995
      %v1012 = vadd.f32 %v959, %v996
      %s1013 = scalar_lea.vmem [#allocation2], 24
      %v1014 = vld [vmem:[%s1013] sm:$0xff]
      %v1015 = vld [vmem:[%s1013 + $0x8] sm:$0xff]
      %v1016 = vld [vmem:[%s1013 + $0x18] sm:$0xff]
      %v1017 = vld [vmem:[%s1013 + $0x20] sm:$0xff]
      %v1018 = vld [vmem:[%s1013 + $0x30] sm:$0xff]
      %v1019 = vld [vmem:[%s1013 + $0x38] sm:$0xff]
      %v1020 = vld [vmem:[%s1013 + $0x48] sm:$0xff]
      %v1021 = vld [vmem:[%s1013 + $0x50] sm:$0xff]
      %v1022 = vld [vmem:[%s1013 + $0x60] sm:$0xff]
      %v1023 = vld [vmem:[%s1013 + $0x68] sm:$0xff]
      %v1024 = vld [vmem:[%s1013 + $0x78] sm:$0xff]
      %v1025 = vld [vmem:[%s1013 + $0x80] sm:$0xff]
      %v1026 = vld [vmem:[%s1013 + $0x90] sm:$0xff]
      %v1027 = vld [vmem:[%s1013 + $0x98] sm:$0xff]
      %v1028 = vld [vmem:[%s1013 + $0xa8] sm:$0xff]
      %v1029 = vld [vmem:[%s1013 + $0xb0] sm:$0xff]
      %v1030 = vld [vmem:[%s3 + $0x3] sm:$0x1]
      %v1031 = vlaneseq
      %v1032 = vshrl.u32 %v1031, 7
      %v1033 = vsub.s32 0, %v1032
      %v1034 = vrot.slane %v1030, %v1033
      %v1035 = vmul.f32 %v1014, %v1034
      %v1036 = vmul.f32 %v1015, %v1034
      %v1037 = vmul.f32 %v1016, %v1034
      %v1038 = vmul.f32 %v1017, %v1034
      %v1039 = vmul.f32 %v1018, %v1034
      %v1040 = vmul.f32 %v1019, %v1034
      %v1041 = vmul.f32 %v1020, %v1034
      %v1042 = vmul.f32 %v1021, %v1034
      %v1043 = vmul.f32 %v1022, %v1034
      %v1044 = vmul.f32 %v1023, %v1034
      %v1045 = vmul.f32 %v1024, %v1034
      %v1046 = vmul.f32 %v1025, %v1034
      %v1047 = vmul.f32 %v1026, %v1034
      %v1048 = vmul.f32 %v1027, %v1034
      %v1049 = vmul.f32 %v1028, %v1034
      %v1050 = vmul.f32 %v1029, %v1034
      %v1051 = vadd.f32 %v997, %v1035
      %v1052 = vadd.f32 %v998, %v1036
      %v1053 = vadd.f32 %v999, %v1037
      %v1054 = vadd.f32 %v1000, %v1038
      %v1055 = vadd.f32 %v1001, %v1039
      %v1056 = vadd.f32 %v1002, %v1040
      %v1057 = vadd.f32 %v1003, %v1041
      %v1058 = vadd.f32 %v1004, %v1042
      %v1059 = vadd.f32 %v1005, %v1043
      %v1060 = vadd.f32 %v1006, %v1044
      %v1061 = vadd.f32 %v1007, %v1045
      %v1062 = vadd.f32 %v1008, %v1046
      %v1063 = vadd.f32 %v1009, %v1047
      %v1064 = vadd.f32 %v1010, %v1048
      %v1065 = vadd.f32 %v1011, %v1049
      %v1066 = vadd.f32 %v1012, %v1050
      %v1067 = vld [vmem:[%s1013 + $0x1] sm:$0xff]
      %v1068 = vld [vmem:[%s1013 + $0x9] sm:$0xff]
      %v1069 = vld [vmem:[%s1013 + $0x19] sm:$0xff]
      %v1070 = vld [vmem:[%s1013 + $0x21] sm:$0xff]
      %v1071 = vld [vmem:[%s1013 + $0x31] sm:$0xff]
      %v1072 = vld [vmem:[%s1013 + $0x39] sm:$0xff]
      %v1073 = vld [vmem:[%s1013 + $0x49] sm:$0xff]
      %v1074 = vld [vmem:[%s1013 + $0x51] sm:$0xff]
      %v1075 = vld [vmem:[%s1013 + $0x61] sm:$0xff]
      %v1076 = vld [vmem:[%s1013 + $0x69] sm:$0xff]
      %v1077 = vld [vmem:[%s1013 + $0x79] sm:$0xff]
      %v1078 = vld [vmem:[%s1013 + $0x81] sm:$0xff]
      %v1079 = vld [vmem:[%s1013 + $0x91] sm:$0xff]
      %v1080 = vld [vmem:[%s1013 + $0x99] sm:$0xff]
      %v1081 = vld [vmem:[%s1013 + $0xa9] sm:$0xff]
      %v1082 = vld [vmem:[%s1013 + $0xb1] sm:$0xff]
      %v1083 = vld [vmem:[%s3 + $0x4] sm:$0x1]
      %v1084 = vlaneseq
      %v1085 = vshrl.u32 %v1084, 7
      %v1086 = vsub.s32 0, %v1085
      %v1087 = vrot.slane %v1083, %v1086
      %v1088 = vmul.f32 %v1067, %v1087
      %v1089 = vmul.f32 %v1068, %v1087
      %v1090 = vmul.f32 %v1069, %v1087
      %v1091 = vmul.f32 %v1070, %v1087
      %v1092 = vmul.f32 %v1071, %v1087
      %v1093 = vmul.f32 %v1072, %v1087
      %v1094 = vmul.f32 %v1073, %v1087
      %v1095 = vmul.f32 %v1074, %v1087
      %v1096 = vmul.f32 %v1075, %v1087
      %v1097 = vmul.f32 %v1076, %v1087
      %v1098 = vmul.f32 %v1077, %v1087
      %v1099 = vmul.f32 %v1078, %v1087
      %v1100 = vmul.f32 %v1079, %v1087
      %v1101 = vmul.f32 %v1080, %v1087
      %v1102 = vmul.f32 %v1081, %v1087
      %v1103 = vmul.f32 %v1082, %v1087
      %v1104 = vadd.f32 %v1051, %v1088
      %v1105 = vadd.f32 %v1052, %v1089
      %v1106 = vadd.f32 %v1053, %v1090
      %v1107 = vadd.f32 %v1054, %v1091
      %v1108 = vadd.f32 %v1055, %v1092
      %v1109 = vadd.f32 %v1056, %v1093
      %v1110 = vadd.f32 %v1057, %v1094
      %v1111 = vadd.f32 %v1058, %v1095
      %v1112 = vadd.f32 %v1059, %v1096
      %v1113 = vadd.f32 %v1060, %v1097
      %v1114 = vadd.f32 %v1061, %v1098
      %v1115 = vadd.f32 %v1062, %v1099
      %v1116 = vadd.f32 %v1063, %v1100
      %v1117 = vadd.f32 %v1064, %v1101
      %v1118 = vadd.f32 %v1065, %v1102
      %v1119 = vadd.f32 %v1066, %v1103
      %v1120 = vld [vmem:[%s1013 + $0x2] sm:$0xff]
      %v1121 = vld [vmem:[%s1013 + $0xa] sm:$0xff]
      %v1122 = vld [vmem:[%s1013 + $0x1a] sm:$0xff]
      %v1123 = vld [vmem:[%s1013 + $0x22] sm:$0xff]
      %v1124 = vld [vmem:[%s1013 + $0x32] sm:$0xff]
      %v1125 = vld [vmem:[%s1013 + $0x3a] sm:$0xff]
      %v1126 = vld [vmem:[%s1013 + $0x4a] sm:$0xff]
      %v1127 = vld [vmem:[%s1013 + $0x52] sm:$0xff]
      %v1128 = vld [vmem:[%s1013 + $0x62] sm:$0xff]
      %v1129 = vld [vmem:[%s1013 + $0x6a] sm:$0xff]
      %v1130 = vld [vmem:[%s1013 + $0x7a] sm:$0xff]
      %v1131 = vld [vmem:[%s1013 + $0x82] sm:$0xff]
      %v1132 = vld [vmem:[%s1013 + $0x92] sm:$0xff]
      %v1133 = vld [vmem:[%s1013 + $0x9a] sm:$0xff]
      %v1134 = vld [vmem:[%s1013 + $0xaa] sm:$0xff]
      %v1135 = vld [vmem:[%s1013 + $0xb2] sm:$0xff]
      %v1136 = vld [vmem:[%s3 + $0x5] sm:$0x1]
      %v1137 = vlaneseq
      %v1138 = vshrl.u32 %v1137, 7
      %v1139 = vsub.s32 0, %v1138
      %v1140 = vrot.slane %v1136, %v1139
      %v1141 = vmul.f32 %v1120, %v1140
      %v1142 = vmul.f32 %v1121, %v1140
      %v1143 = vmul.f32 %v1122, %v1140
      %v1144 = vmul.f32 %v1123, %v1140
      %v1145 = vmul.f32 %v1124, %v1140
      %v1146 = vmul.f32 %v1125, %v1140
      %v1147 = vmul.f32 %v1126, %v1140
      %v1148 = vmul.f32 %v1127, %v1140
      %v1149 = vmul.f32 %v1128, %v1140
      %v1150 = vmul.f32 %v1129, %v1140
      %v1151 = vmul.f32 %v1130, %v1140
      %v1152 = vmul.f32 %v1131, %v1140
      %v1153 = vmul.f32 %v1132, %v1140
      %v1154 = vmul.f32 %v1133, %v1140
      %v1155 = vmul.f32 %v1134, %v1140
      %v1156 = vmul.f32 %v1135, %v1140
      %v1157 = vadd.f32 %v1104, %v1141
      %v1158 = vadd.f32 %v1105, %v1142
      %v1159 = vadd.f32 %v1106, %v1143
      %v1160 = vadd.f32 %v1107, %v1144
      %v1161 = vadd.f32 %v1108, %v1145
      %v1162 = vadd.f32 %v1109, %v1146
      %v1163 = vadd.f32 %v1110, %v1147
      %v1164 = vadd.f32 %v1111, %v1148
      %v1165 = vadd.f32 %v1112, %v1149
      %v1166 = vadd.f32 %v1113, %v1150
      %v1167 = vadd.f32 %v1114, %v1151
      %v1168 = vadd.f32 %v1115, %v1152
      %v1169 = vadd.f32 %v1116, %v1153
      %v1170 = vadd.f32 %v1117, %v1154
      %v1171 = vadd.f32 %v1118, %v1155
      %v1172 = vadd.f32 %v1119, %v1156
      %s1173 = scalar_lea.vmem [#allocation2], 48
      %v1174 = vld [vmem:[%s1173] sm:$0xff]
      %v1175 = vld [vmem:[%s1173 + $0x8] sm:$0xff]
      %v1176 = vld [vmem:[%s1173 + $0x18] sm:$0xff]
      %v1177 = vld [vmem:[%s1173 + $0x20] sm:$0xff]
      %v1178 = vld [vmem:[%s1173 + $0x30] sm:$0xff]
      %v1179 = vld [vmem:[%s1173 + $0x38] sm:$0xff]
      %v1180 = vld [vmem:[%s1173 + $0x48] sm:$0xff]
      %v1181 = vld [vmem:[%s1173 + $0x50] sm:$0xff]
      %v1182 = vld [vmem:[%s1173 + $0x60] sm:$0xff]
      %v1183 = vld [vmem:[%s1173 + $0x68] sm:$0xff]
      %v1184 = vld [vmem:[%s1173 + $0x78] sm:$0xff]
      %v1185 = vld [vmem:[%s1173 + $0x80] sm:$0xff]
      %v1186 = vld [vmem:[%s1173 + $0x90] sm:$0xff]
      %v1187 = vld [vmem:[%s1173 + $0x98] sm:$0xff]
      %v1188 = vld [vmem:[%s1173 + $0xa8] sm:$0xff]
      %v1189 = vld [vmem:[%s1173 + $0xb0] sm:$0xff]
      %v1190 = vld [vmem:[%s3 + $0x6] sm:$0x1]
      %v1191 = vlaneseq
      %v1192 = vshrl.u32 %v1191, 7
      %v1193 = vsub.s32 0, %v1192
      %v1194 = vrot.slane %v1190, %v1193
      %v1195 = vmul.f32 %v1174, %v1194
      %v1196 = vmul.f32 %v1175, %v1194
      %v1197 = vmul.f32 %v1176, %v1194
      %v1198 = vmul.f32 %v1177, %v1194
      %v1199 = vmul.f32 %v1178, %v1194
      %v1200 = vmul.f32 %v1179, %v1194
      %v1201 = vmul.f32 %v1180, %v1194
      %v1202 = vmul.f32 %v1181, %v1194
      %v1203 = vmul.f32 %v1182, %v1194
      %v1204 = vmul.f32 %v1183, %v1194
      %v1205 = vmul.f32 %v1184, %v1194
      %v1206 = vmul.f32 %v1185, %v1194
      %v1207 = vmul.f32 %v1186, %v1194
      %v1208 = vmul.f32 %v1187, %v1194
      %v1209 = vmul.f32 %v1188, %v1194
      %v1210 = vmul.f32 %v1189, %v1194
      %v1211 = vadd.f32 %v1157, %v1195
      %v1212 = vadd.f32 %v1158, %v1196
      %v1213 = vadd.f32 %v1159, %v1197
      %v1214 = vadd.f32 %v1160, %v1198
      %v1215 = vadd.f32 %v1161, %v1199
      %v1216 = vadd.f32 %v1162, %v1200
      %v1217 = vadd.f32 %v1163, %v1201
      %v1218 = vadd.f32 %v1164, %v1202
      %v1219 = vadd.f32 %v1165, %v1203
      %v1220 = vadd.f32 %v1166, %v1204
      %v1221 = vadd.f32 %v1167, %v1205
      %v1222 = vadd.f32 %v1168, %v1206
      %v1223 = vadd.f32 %v1169, %v1207
      %v1224 = vadd.f32 %v1170, %v1208
      %v1225 = vadd.f32 %v1171, %v1209
      %v1226 = vadd.f32 %v1172, %v1210
      %v1227 = vld [vmem:[%s1173 + $0x1] sm:$0xff]
      %v1228 = vld [vmem:[%s1173 + $0x9] sm:$0xff]
      %v1229 = vld [vmem:[%s1173 + $0x19] sm:$0xff]
      %v1230 = vld [vmem:[%s1173 + $0x21] sm:$0xff]
      %v1231 = vld [vmem:[%s1173 + $0x31] sm:$0xff]
      %v1232 = vld [vmem:[%s1173 + $0x39] sm:$0xff]
      %v1233 = vld [vmem:[%s1173 + $0x49] sm:$0xff]
      %v1234 = vld [vmem:[%s1173 + $0x51] sm:$0xff]
      %v1235 = vld [vmem:[%s1173 + $0x61] sm:$0xff]
      %v1236 = vld [vmem:[%s1173 + $0x69] sm:$0xff]
      %v1237 = vld [vmem:[%s1173 + $0x79] sm:$0xff]
      %v1238 = vld [vmem:[%s1173 + $0x81] sm:$0xff]
      %v1239 = vld [vmem:[%s1173 + $0x91] sm:$0xff]
      %v1240 = vld [vmem:[%s1173 + $0x99] sm:$0xff]
      %v1241 = vld [vmem:[%s1173 + $0xa9] sm:$0xff]
      %v1242 = vld [vmem:[%s1173 + $0xb1] sm:$0xff]
      %v1243 = vld [vmem:[%s3 + $0x7] sm:$0x1]
      %v1244 = vlaneseq
      %v1245 = vshrl.u32 %v1244, 7
      %v1246 = vsub.s32 0, %v1245
      %v1247 = vrot.slane %v1243, %v1246
      %v1248 = vmul.f32 %v1227, %v1247
      %v1249 = vmul.f32 %v1228, %v1247
      %v1250 = vmul.f32 %v1229, %v1247
      %v1251 = vmul.f32 %v1230, %v1247
      %v1252 = vmul.f32 %v1231, %v1247
      %v1253 = vmul.f32 %v1232, %v1247
      %v1254 = vmul.f32 %v1233, %v1247
      %v1255 = vmul.f32 %v1234, %v1247
      %v1256 = vmul.f32 %v1235, %v1247
      %v1257 = vmul.f32 %v1236, %v1247
      %v1258 = vmul.f32 %v1237, %v1247
      %v1259 = vmul.f32 %v1238, %v1247
      %v1260 = vmul.f32 %v1239, %v1247
      %v1261 = vmul.f32 %v1240, %v1247
      %v1262 = vmul.f32 %v1241, %v1247
      %v1263 = vmul.f32 %v1242, %v1247
      %v1264 = vadd.f32 %v1211, %v1248
      %v1265 = vadd.f32 %v1212, %v1249
      %v1266 = vadd.f32 %v1213, %v1250
      %v1267 = vadd.f32 %v1214, %v1251
      %v1268 = vadd.f32 %v1215, %v1252
      %v1269 = vadd.f32 %v1216, %v1253
      %v1270 = vadd.f32 %v1217, %v1254
      %v1271 = vadd.f32 %v1218, %v1255
      %v1272 = vadd.f32 %v1219, %v1256
      %v1273 = vadd.f32 %v1220, %v1257
      %v1274 = vadd.f32 %v1221, %v1258
      %v1275 = vadd.f32 %v1222, %v1259
      %v1276 = vadd.f32 %v1223, %v1260
      %v1277 = vadd.f32 %v1224, %v1261
      %v1278 = vadd.f32 %v1225, %v1262
      %v1279 = vadd.f32 %v1226, %v1263
      %v1280 = vld [vmem:[%s1173 + $0x2] sm:$0xff]
      %v1281 = vld [vmem:[%s1173 + $0xa] sm:$0xff]
      %v1282 = vld [vmem:[%s1173 + $0x1a] sm:$0xff]
      %v1283 = vld [vmem:[%s1173 + $0x22] sm:$0xff]
      %v1284 = vld [vmem:[%s1173 + $0x32] sm:$0xff]
      %v1285 = vld [vmem:[%s1173 + $0x3a] sm:$0xff]
      %v1286 = vld [vmem:[%s1173 + $0x4a] sm:$0xff]
      %v1287 = vld [vmem:[%s1173 + $0x52] sm:$0xff]
      %v1288 = vld [vmem:[%s1173 + $0x62] sm:$0xff]
      %v1289 = vld [vmem:[%s1173 + $0x6a] sm:$0xff]
      %v1290 = vld [vmem:[%s1173 + $0x7a] sm:$0xff]
      %v1291 = vld [vmem:[%s1173 + $0x82] sm:$0xff]
      %v1292 = vld [vmem:[%s1173 + $0x92] sm:$0xff]
      %v1293 = vld [vmem:[%s1173 + $0x9a] sm:$0xff]
      %v1294 = vld [vmem:[%s1173 + $0xaa] sm:$0xff]
      %v1295 = vld [vmem:[%s1173 + $0xb2] sm:$0xff]
      %v1296 = vld [vmem:[%s3 + $0x8] sm:$0x1]
      %v1297 = vlaneseq
      %v1298 = vshrl.u32 %v1297, 7
      %v1299 = vsub.s32 0, %v1298
      %v1300 = vrot.slane %v1296, %v1299
      %v1301 = vmul.f32 %v1280, %v1300
      %v1302 = vmul.f32 %v1281, %v1300
      %v1303 = vmul.f32 %v1282, %v1300
      %v1304 = vmul.f32 %v1283, %v1300
      %v1305 = vmul.f32 %v1284, %v1300
      %v1306 = vmul.f32 %v1285, %v1300
      %v1307 = vmul.f32 %v1286, %v1300
      %v1308 = vmul.f32 %v1287, %v1300
      %v1309 = vmul.f32 %v1288, %v1300
      %v1310 = vmul.f32 %v1289, %v1300
      %v1311 = vmul.f32 %v1290, %v1300
      %v1312 = vmul.f32 %v1291, %v1300
      %v1313 = vmul.f32 %v1292, %v1300
      %v1314 = vmul.f32 %v1293, %v1300
      %v1315 = vmul.f32 %v1294, %v1300
      %v1316 = vmul.f32 %v1295, %v1300
      %v1317 = vadd.f32 %v1264, %v1301
      %v1318 = vadd.f32 %v1265, %v1302
      %v1319 = vadd.f32 %v1266, %v1303
      %v1320 = vadd.f32 %v1267, %v1304
      %v1321 = vadd.f32 %v1268, %v1305
      %v1322 = vadd.f32 %v1269, %v1306
      %v1323 = vadd.f32 %v1270, %v1307
      %v1324 = vadd.f32 %v1271, %v1308
      %v1325 = vadd.f32 %v1272, %v1309
      %v1326 = vadd.f32 %v1273, %v1310
      %v1327 = vadd.f32 %v1274, %v1311
      %v1328 = vadd.f32 %v1275, %v1312
      %v1329 = vadd.f32 %v1276, %v1313
      %v1330 = vadd.f32 %v1277, %v1314
      %v1331 = vadd.f32 %v1278, %v1315
      %v1332 = vadd.f32 %v1279, %v1316
      %v1333 = vld [vmem:[%s4] sm:$0x1]
      %v1335 = vlaneseq
      %v1336 = vshrl.u32 %v1335, 7
      %v1337 = vsub.s32 0, %v1336
      %v1338 = vrot.slane %v1333, %v1337
      %v1340 = vadd.f32 %v1317, %v1338
      %v1341 = vadd.f32 %v1318, %v1338
      %v1342 = vadd.f32 %v1319, %v1338
      %v1343 = vadd.f32 %v1320, %v1338
      %v1344 = vadd.f32 %v1321, %v1338
      %v1345 = vadd.f32 %v1322, %v1338
      %v1346 = vadd.f32 %v1323, %v1338
      %v1347 = vadd.f32 %v1324, %v1338
      %v1348 = vadd.f32 %v1325, %v1338
      %v1349 = vadd.f32 %v1326, %v1338
      %v1350 = vadd.f32 %v1327, %v1338
      %v1351 = vadd.f32 %v1328, %v1338
      %v1352 = vadd.f32 %v1329, %v1338
      %v1353 = vadd.f32 %v1330, %v1338
      %v1354 = vadd.f32 %v1331, %v1338
      %v1355 = vadd.f32 %v1332, %v1338
      %v1356 = vmax.f32 %v1340, 0.0
      %v1357 = vmax.f32 %v1341, 0.0
      %v1358 = vmax.f32 %v1342, 0.0
      %v1359 = vmax.f32 %v1343, 0.0
      %v1360 = vmax.f32 %v1344, 0.0
      %v1361 = vmax.f32 %v1345, 0.0
      %v1362 = vmax.f32 %v1346, 0.0
      %v1363 = vmax.f32 %v1347, 0.0
      %v1364 = vmax.f32 %v1348, 0.0
      %v1365 = vmax.f32 %v1349, 0.0
      %v1366 = vmax.f32 %v1350, 0.0
      %v1367 = vmax.f32 %v1351, 0.0
      %v1368 = vmax.f32 %v1352, 0.0
      %v1369 = vmax.f32 %v1353, 0.0
      %v1370 = vmax.f32 %v1354, 0.0
      %v1371 = vmax.f32 %v1355, 0.0
      %v1372 = vld [vmem:[%s5] sm:$0xff]
      %v1373 = vld [vmem:[%s5 + $0x8] sm:$0xff]
      %v1374 = vld [vmem:[%s5 + $0x10] sm:$0xff]
      %v1375 = vld [vmem:[%s5 + $0x18] sm:$0xff]
      %v1376 = vld [vmem:[%s6] sm:$0x1]
      %v1378 = vlaneseq
      %v1379 = vshrl.u32 %v1378, 7
      %v1380 = vsub.s32 0, %v1379
      %v1381 = vrot.slane %v1376, %v1380
      %v1384 = vsel %vm823, %v1356, 0
      %v1387 = vsel %vm823, %v1357, 0
      %v1390 = vsel %vm823, %v1358, 0
      %v1393 = vsel %vm823, %v1359, 0
      %v1396 = vsel %vm823, %v1360, 0
      %v1399 = vsel %vm823, %v1361, 0
      %v1402 = vsel %vm823, %v1362, 0
      %v1405 = vsel %vm823, %v1363, 0
      %v1408 = vsel %vm823, %v1364, 0
      %v1411 = vsel %vm823, %v1365, 0
      %v1414 = vsel %vm823, %v1366, 0
      %v1417 = vsel %vm823, %v1367, 0
      %v1420 = vsel %vm823, %v1368, 0
      %v1423 = vsel %vm823, %v1369, 0
      %v1426 = vsel %vm823, %v1370, 0
      %v1429 = vsel %vm823, %v1371, 0
      %1431 = vmatprep.subr.mxu0 0.0
      %1432 = vmatpush1.msra.mxu0 %v1372
      %1433 = vmatprep.subr.mxu0 0.0
      %1434 = vmatpush1.msra.mxu0 %v1373
      %1435 = vmatprep.subr.mxu0 0.0
      %1436 = vmatpush1.msra.mxu0 %v1374
      %1437 = vmatprep.subr.mxu0 0.0
      %1438 = vmatpush1.msra.mxu0 %v1375
      %1439 = vmatprep.subr.mxu0 0.0
      %1440 = vmatpush1.msra.mxu0 0.0
      %1441 = vmatprep.subr.mxu0 0.0
      %1442 = vmatpush1.msra.mxu0 0.0
      %1443 = vmatprep.subr.mxu0 0.0
      %1444 = vmatpush1.msra.mxu0 0.0
      %1445 = vmatprep.subr.mxu0 0.0
      %1446 = vmatpush1.msra.mxu0 0.0
      %1447 = vmatprep.subr.mxu0 0.0
      %1448 = vmatpush1.msra.mxu0 0.0
      %1449 = vmatprep.subr.mxu0 0.0
      %1450 = vmatpush1.msra.mxu0 0.0
      %1451 = vmatprep.subr.mxu0 0.0
      %1452 = vmatpush1.msra.mxu0 0.0
      %1453 = vmatprep.subr.mxu0 0.0
      %1454 = vmatpush1.msra.mxu0 0.0
      %1455 = vmatprep.subr.mxu0 0.0
      %1456 = vmatpush1.msra.mxu0 0.0
      %1457 = vmatprep.subr.mxu0 0.0
      %1458 = vmatpush1.msra.mxu0 0.0
      %1459 = vmatprep.subr.mxu0 0.0
      %1460 = vmatpush1.msra.mxu0 0.0
      %1461 = vmatprep.subr.mxu0 0.0
      %1462 = vmatpush1.msra.mxu0 0.0
      %1463 = vmatprep.subr.mxu0 0.0
      %1464 = vmatpush1.msra.mxu0 0.0
      %1465 = vmatprep.subr.mxu0 0.0
      %1466 = vmatpush1.msra.mxu0 0.0
      %1467 = vmatprep.subr.mxu0 0.0
      %1468 = vmatpush1.msra.mxu0 0.0
      %1469 = vmatprep.subr.mxu0 0.0
      %1470 = vmatpush1.msra.mxu0 0.0
      %1471 = vmatprep.subr.mxu0 0.0
      %1472 = vmatpush1.msra.mxu0 0.0
      %1473 = vmatprep.subr.mxu0 0.0
      %1474 = vmatpush1.msra.mxu0 0.0
      %1475 = vmatprep.subr.mxu0 0.0
      %1476 = vmatpush1.msra.mxu0 0.0
      %1477 = vmatprep.subr.mxu0 0.0
      %1478 = vmatpush1.msra.mxu0 0.0
      %1479 = vmatprep.subr.mxu0 0.0
      %1480 = vmatpush1.msra.mxu0 0.0
      %1481 = vmatprep.subr.mxu0 0.0
      %1482 = vmatpush1.msra.mxu0 0.0
      %1483 = vmatprep.subr.mxu0 0.0
      %1484 = vmatpush1.msra.mxu0 0.0
      %1485 = vmatprep.subr.mxu0 0.0
      %1486 = vmatpush1.msra.mxu0 0.0
      %1487 = vmatprep.subr.mxu0 0.0
      %1488 = vmatpush1.msra.mxu0 0.0
      %1489 = vmatprep.subr.mxu0 0.0
      %1490 = vmatpush1.msra.mxu0 0.0
      %1491 = vmatprep.subr.mxu0 0.0
      %1492 = vmatpush1.msra.mxu0 0.0
      %1493 = vmatprep.subr.mxu0 0.0
      %1494 = vmatpush1.msra.mxu0 0.0
      %1495 = vmatprep.mubr.f32.mxu0 0.0
      %1496 = vmatmul.mubr.f32.gmra.mrb[0].mxu0 %v1384
      %v1497 = vpop.f32.mrb[0].mxu0
      %v1498 = vadd.f32 %v1381, %v1497
      %v1499 = vpop.f32.mrb[0].mxu0
      %1500 = vmatprep.mubr.f32.mxu0 0.0
      %1501 = vmatmul.mubr.f32.gmra.mrb[0].mxu0 %v1387
      %v1502 = vpop.f32.mrb[0].mxu0
      %v1503 = vadd.f32 %v1381, %v1502
      %v1504 = vpop.f32.mrb[0].mxu0
      %1505 = vmatprep.mubr.f32.mxu0 0.0
      %1506 = vmatmul.mubr.f32.gmra.mrb[0].mxu0 %v1390
      %v1507 = vpop.f32.mrb[0].mxu0
      %v1508 = vadd.f32 %v1381, %v1507
      %v1509 = vpop.f32.mrb[0].mxu0
      %1510 = vmatprep.mubr.f32.mxu0 0.0
      %1511 = vmatmul.mubr.f32.gmra.mrb[0].mxu0 %v1393
      %v1512 = vpop.f32.mrb[0].mxu0
      %v1513 = vadd.f32 %v1381, %v1512
      %v1514 = vpop.f32.mrb[0].mxu0
      %1515 = vmatprep.mubr.f32.mxu0 0.0
      %1516 = vmatmul.mubr.f32.gmra.mrb[0].mxu0 %v1396
      %v1517 = vpop.f32.mrb[0].mxu0
      %v1518 = vadd.f32 %v1381, %v1517
      %v1519 = vpop.f32.mrb[0].mxu0
      %1520 = vmatprep.mubr.f32.mxu0 0.0
      %1521 = vmatmul.mubr.f32.gmra.mrb[0].mxu0 %v1399
      %v1522 = vpop.f32.mrb[0].mxu0
      %v1523 = vadd.f32 %v1381, %v1522
      %v1524 = vpop.f32.mrb[0].mxu0
      %1525 = vmatprep.mubr.f32.mxu0 0.0
      %1526 = vmatmul.mubr.f32.gmra.mrb[0].mxu0 %v1402
      %v1527 = vpop.f32.mrb[0].mxu0
      %v1528 = vadd.f32 %v1381, %v1527
      %v1529 = vpop.f32.mrb[0].mxu0
      %1530 = vmatprep.mubr.f32.mxu0 0.0
      %1531 = vmatmul.mubr.f32.gmra.mrb[0].mxu0 %v1405
      %v1532 = vpop.f32.mrb[0].mxu0
      %v1533 = vadd.f32 %v1381, %v1532
      %v1534 = vpop.f32.mrb[0].mxu0
      %1535 = vmatprep.mubr.f32.mxu0 0.0
      %1536 = vmatmul.mubr.f32.gmra.mrb[0].mxu0 %v1408
      %v1537 = vpop.f32.mrb[0].mxu0
      %v1538 = vadd.f32 %v1381, %v1537
      %v1539 = vpop.f32.mrb[0].mxu0
      %1540 = vmatprep.mubr.f32.mxu0 0.0
      %1541 = vmatmul.mubr.f32.gmra.mrb[0].mxu0 %v1411
      %v1542 = vpop.f32.mrb[0].mxu0
      %v1543 = vadd.f32 %v1381, %v1542
      %v1544 = vpop.f32.mrb[0].mxu0
      %1545 = vmatprep.mubr.f32.mxu0 0.0
      %1546 = vmatmul.mubr.f32.gmra.mrb[0].mxu0 %v1414
      %v1547 = vpop.f32.mrb[0].mxu0
      %v1548 = vadd.f32 %v1381, %v1547
      %v1549 = vpop.f32.mrb[0].mxu0
      %1550 = vmatprep.mubr.f32.mxu0 0.0
      %1551 = vmatmul.mubr.f32.gmra.mrb[0].mxu0 %v1417
      %v1552 = vpop.f32.mrb[0].mxu0
      %v1553 = vadd.f32 %v1381, %v1552
      %v1554 = vpop.f32.mrb[0].mxu0
      %1555 = vmatprep.mubr.f32.mxu0 0.0
      %1556 = vmatmul.mubr.f32.gmra.mrb[0].mxu0 %v1420
      %v1557 = vpop.f32.mrb[0].mxu0
      %v1558 = vadd.f32 %v1381, %v1557
      %v1559 = vpop.f32.mrb[0].mxu0
      %1560 = vmatprep.mubr.f32.mxu0 0.0
      %1561 = vmatmul.mubr.f32.gmra.mrb[0].mxu0 %v1423
      %v1562 = vpop.f32.mrb[0].mxu0
      %v1563 = vadd.f32 %v1381, %v1562
      %v1564 = vpop.f32.mrb[0].mxu0
      %1565 = vmatprep.mubr.f32.mxu0 0.0
      %1566 = vmatmul.mubr.f32.gmra.mrb[0].mxu0 %v1426
      %v1567 = vpop.f32.mrb[0].mxu0
      %v1568 = vadd.f32 %v1381, %v1567
      %v1569 = vpop.f32.mrb[0].mxu0
      %1570 = vmatprep.mubr.f32.mxu0 0.0
      %1571 = vmatmul.mubr.f32.gmra.mrb[0].mxu0 %v1429
      %v1572 = vpop.f32.mrb[0].mxu0
      %v1573 = vadd.f32 %v1381, %v1572
      %v1574 = vpop.f32.mrb[0].mxu0
      %1575 = vdwg.mxu0
      %s1576 = sadd.s32 %s304, 1
      %s1577 = smul.u32 %s1576, 24
      %s1578 = scalar_lea.vmem %s292, %s1577
      %v1579 = vld [vmem:[%s1578 + $0x1] sm:$0xff]
      %v1580 = vld [vmem:[%s1578 + $0x9] sm:$0xff]
      %v1581 = vld [vmem:[%s1578 + $0x19] sm:$0xff]
      %v1582 = vld [vmem:[%s1578 + $0x21] sm:$0xff]
      %v1583 = vld [vmem:[%s1578 + $0x31] sm:$0xff]
      %v1584 = vld [vmem:[%s1578 + $0x39] sm:$0xff]
      %v1585 = vld [vmem:[%s1578 + $0x49] sm:$0xff]
      %v1586 = vld [vmem:[%s1578 + $0x51] sm:$0xff]
      %v1587 = vld [vmem:[%s1578 + $0x61] sm:$0xff]
      %v1588 = vld [vmem:[%s1578 + $0x69] sm:$0xff]
      %v1589 = vld [vmem:[%s1578 + $0x79] sm:$0xff]
      %v1590 = vld [vmem:[%s1578 + $0x81] sm:$0xff]
      %v1591 = vld [vmem:[%s1578 + $0x91] sm:$0xff]
      %v1592 = vld [vmem:[%s1578 + $0x99] sm:$0xff]
      %v1593 = vld [vmem:[%s1578 + $0xa9] sm:$0xff]
      %v1594 = vld [vmem:[%s1578 + $0xb1] sm:$0xff]
      %v1595 = vadd.f32 %v1498, %v1579
      %v1596 = vadd.f32 %v1503, %v1580
      %v1597 = vadd.f32 %v1508, %v1581
      %v1598 = vadd.f32 %v1513, %v1582
      %v1599 = vadd.f32 %v1518, %v1583
      %v1600 = vadd.f32 %v1523, %v1584
      %v1601 = vadd.f32 %v1528, %v1585
      %v1602 = vadd.f32 %v1533, %v1586
      %v1603 = vadd.f32 %v1538, %v1587
      %v1604 = vadd.f32 %v1543, %v1588
      %v1605 = vadd.f32 %v1548, %v1589
      %v1606 = vadd.f32 %v1553, %v1590
      %v1607 = vadd.f32 %v1558, %v1591
      %v1608 = vadd.f32 %v1563, %v1592
      %v1609 = vadd.f32 %v1568, %v1593
      %v1610 = vadd.f32 %v1573, %v1594
      %1611 = vst.msk [vmem:[%s302] sm:$0xff] %vm346, %v1595
      %1612 = vst.msk [vmem:[%s302 + $0x8] sm:$0xff] %vm346, %v1596
      %1613 = vst.msk [vmem:[%s302 + $0x10] sm:$0xff] %vm346, %v1597
      %1614 = vst.msk [vmem:[%s302 + $0x18] sm:$0xff] %vm346, %v1598
      %1615 = vst.msk [vmem:[%s302 + $0x20] sm:$0xff] %vm346, %v1599
      %1616 = vst.msk [vmem:[%s302 + $0x28] sm:$0xff] %vm346, %v1600
      %1617 = vst.msk [vmem:[%s302 + $0x30] sm:$0xff] %vm346, %v1601
      %1618 = vst.msk [vmem:[%s302 + $0x38] sm:$0xff] %vm346, %v1602
      %1619 = vst.msk [vmem:[%s302 + $0x40] sm:$0xff] %vm346, %v1603
      %1620 = vst.msk [vmem:[%s302 + $0x48] sm:$0xff] %vm346, %v1604
      %1621 = vst.msk [vmem:[%s302 + $0x50] sm:$0xff] %vm346, %v1605
      %1622 = vst.msk [vmem:[%s302 + $0x58] sm:$0xff] %vm346, %v1606
      %1623 = vst.msk [vmem:[%s302 + $0x60] sm:$0xff] %vm346, %v1607
      %1624 = vst.msk [vmem:[%s302 + $0x68] sm:$0xff] %vm346, %v1608
      %1625 = vst.msk [vmem:[%s302 + $0x70] sm:$0xff] %vm346, %v1609
      %1626 = vst.msk [vmem:[%s302 + $0x78] sm:$0xff] %vm346, %v1610
      %s1627 = smul.u32 8, %s23
      %p1628 = scmp.lt.s32.totalorder %s22, 1
      %s1629 = scalar_select %p1628, %s22, 1
      %p1630 = scmp.lt.s32.totalorder %s1627, 15
      %s1631 = scalar_select %p1630, %s1627, 15
      %s1632 = smul.addr %s1631, 2
      %s1633 = smul.addr %s1629, 32
      %s1634 = sadd.s32 %s1632, %s1633
      %s1635 = smul.addr %s1634, 8
      %s1636 = scalar_lea.vmem %s7, %s1635
      // Predicated region
      $region49: #{_lambda_.1} parent=47 // pred_check
        %p1637 = pneg %p202
      $region50: #{_lambda_.1} parent=47 // pred_check_branch
        %1639 = sbr.rel (%p1637) target = $region52
      $region51: #{_lambda_.1} parent=47 // pred_region
        %s1640 = smul.u32 8, %s23
      $region52: #{_lambda_.1} parent=47 // pred_fallthru
        _
    $region48: #{_lambda_.1} parent=5 // pred_fallthru
      _
    %p1641 = scmp.le.s32.totalorder 2, %s13
    // Predicated region
    $region53: #{_lambda_.1} parent=5 // pred_check
      %p1642 = pneg %p1641
    $region54: #{_lambda_.1} parent=5 // pred_check_branch
      %1644 = sbr.rel (%p1642) target = $region56
    $region55: #{_lambda_.1} parent=5 // pred_region
      %s1645 = ssub.s32 %s13, 2
      // Predicated region
      $region57: #{_lambda_.1} parent=55 // pred_check
        %p1646 = pneg %p208
      $region58: #{_lambda_.1} parent=55 // pred_check_branch
        %1648 = sbr.rel (%p1646) target = $region60
      $region59: #{_lambda_.1} parent=55 // pred_region
        %s1649 = smul.u32 8, %s25
        %p1650 = scmp.lt.s32.totalorder %s24, 1
        %s1651 = scalar_select %p1650, %s24, 1
        %p1652 = scmp.lt.s32.totalorder %s1649, 15
        %s1653 = scalar_select %p1652, %s1649, 15
        %s1654 = smul.addr %s1653, 2
        %s1655 = smul.addr %s1651, 32
        %s1656 = sadd.s32 %s1654, %s1655
        %s1657 = smul.addr %s1656, 8
        %s1658 = scalar_lea.vmem %s7, %s1657
      $region60: #{_lambda_.1} parent=55 // pred_fallthru
        _
    $region56: #{_lambda_.1} parent=5 // pred_fallthru
      _
  $region6: #{_lambda_.1} parent=0 // loop_footer
    %s17 = sadd.s32 1, %s13
  $region7: #{_lambda_.1} parent=0 // loop_footer_branch
    %12 = sbr.rel target = $region3
  $region8: #{_lambda_.1} parent=0 // loop_exit
    _

</llo_original>
